<compile_context>
chip_gen: v5e
topology: v5e:2x2
jax: 0.10.0
libtpu: 0.0.40
codegen_flags: <defaults>
</compile_context>

<pallas_src>
import numpy as np
import jax
import jax.numpy as jnp
from jax import lax
from jax.experimental import pallas as pl
from jax.experimental.pallas import tpu as pltpu

POOL = 64               # AdaptiveAvgPool2d(64) target
N = POOL * POOL         # 4096 spatial tokens after pooling
TP = 512                # row tile for the projection kernel
TF = 2048               # row tile for the elementwise fuse kernel


def _mm_nt(a, b):
    # (m, k) x (n, k) -> (m, n), f32 accumulation on the MXU (avoids in-kernel transposes)
    return lax.dot_general(a, b, (((1,), (1,)), ((), ())),
                           preferred_element_type=jnp.float32)


def _supports_bf16_eup():
    # v5e and older have no bf16 EUP/VPU; keep exp in f32 there.
    try:
        kind = jax.devices()[0].device_kind.lower()
    except Exception:
        return False
    return not any(tag in kind for tag in ("v2", "v3", "v4", "v5"))


_BF16_EXP = _supports_bf16_eup()


def _tpu_vmem_budget_bytes():
    # Per-generation VMEM budget with ~25% headroom for Mosaic internal scratch.
    try:
        cap = int(pltpu.get_tpu_info().vmem_capacity_bytes)
        if cap > 0:
            return (cap * 3) // 4          # ~96 MiB on v5e/v6e, ~48 MiB on v7x
    except Exception:
        pass
    return 48 * 1024 * 1024                # conservative fallback, safe on all generations


# ----------------------------- Pallas kernels --------------------------------

def _proj_kernel(x_ref, wq_ref, bq_ref, wk_ref, bk_ref, wv_ref, bv_ref,
                 q_ref, kT_ref, v_ref):
    # grid = (B, N // TP); x_ref: (TP, C) f32 tile.  Weights are bf16, biases f32.
    xb = x_ref[...].astype(jnp.bfloat16)                              # (TP, C)
    q = _mm_nt(xb, wq_ref[...]) + bq_ref[...]                         # query_conv -> (TP, d)
    kT = lax.dot_general(wk_ref[...], xb, (((1,), (1,)), ((), ())),   # key_conv, stored transposed
                         preferred_element_type=jnp.float32) + bk_ref[...]   # (d, TP)
    v = _mm_nt(xb, wv_ref[...]) + bv_ref[...]                         # value_conv -> (TP, C)
    q_ref[...] = q.astype(jnp.bfloat16)
    kT_ref[...] = kT.astype(jnp.bfloat16)
    v_ref[...] = v.astype(jnp.bfloat16)


def _attn_kernel(xq_ref, q_ref, kT_ref, v_ref, g1_ref, sout_ref):
    # grid = (B, N // TQ), fully parallel.
    # xq_ref: (TQ, C) f32 ; q_ref: (TQ, d) bf16 ; kT_ref: (d, N) bf16 ; v_ref: (N, C) bf16
    energy = jnp.dot(q_ref[...], kT_ref[...],
                     preferred_element_type=jnp.float32)              # (TQ, N) f32
    m = jnp.max(energy, axis=-1, keepdims=True)
    if _BF16_EXP:
        p = jnp.exp((energy - m).astype(jnp.bfloat16))                # bf16 EUP (v6e/v7x)
    else:
        p = jnp.exp(energy - m)                                       # f32 (v5e and older)
    l = jnp.sum(p, axis=-1, keepdims=True, dtype=jnp.float32)         # (TQ, 1) row sums
    pv = jnp.dot(p.astype(jnp.bfloat16), v_ref[...],
                 preferred_element_type=jnp.float32)                  # (TQ, C) f32
    # deferred softmax normalization: scale the (TQ, C) result, not the (TQ, N) matrix
    attn_out = pv * pl.reciprocal(l, approx=True)
    sout_ref[...] = xq_ref[...] + g1_ref[0] * attn_out                # x + gamma_1 * s_out


def _fuse_kernel(x_ref, s_ref, se_ref, g2_ref, out_ref):
    # feature = x + gamma_2 * (s_out * channel_excitation)
    out_ref[...] = x_ref[...] + g2_ref[0] * (s_ref[...] * se_ref[...])


# ------------------------------ glue helpers ---------------------------------

def _adaptive_pool_matrix(in_size, out_size):
    # exact nn.AdaptiveAvgPool2d window formula, expressed as a pooling matrix
    P = np.zeros((out_size, in_size), np.float32)
    for o in range(out_size):
        s = (o * in_size) // out_size
        e = -(-((o + 1) * in_size) // out_size)  # ceil
        P[o, s:e] = 1.0 / (e - s)
    return jnp.asarray(P)


def _bilinear_matrix(src, dst):
    # F.interpolate(mode='bilinear', align_corners=False), no antialias
    M = np.zeros((dst, src), np.float32)
    scale = src / dst
    for t in range(dst):
        x = (t + 0.5) * scale - 0.5
        if x < 0.0:
            x = 0.0
        i0 = min(int(np.floor(x)), src - 1)
        i1 = min(i0 + 1, src - 1)
        w1 = x - i0
        M[t, i0] += 1.0 - w1
        M[t, i1] += w1
    return jnp.asarray(M)


def init_params(key, in_dim, reduction=16):
    d = in_dim // 8
    r = in_dim // reduction
    ks = jax.random.split(key, 8)
    return dict(
        wq=0.1 * jax.random.normal(ks[0], (d, in_dim), jnp.float32),
        bq=0.1 * jax.random.normal(ks[1], (d,), jnp.float32),
        wk=0.1 * jax.random.normal(ks[2], (d, in_dim), jnp.float32),
        bk=0.1 * jax.random.normal(ks[3], (d,), jnp.float32),
        wv=0.1 * jax.random.normal(ks[4], (in_dim, in_dim), jnp.float32),
        bv=0.1 * jax.random.normal(ks[5], (in_dim,), jnp.float32),
        w1=0.2 * jax.random.normal(ks[6], (r, in_dim), jnp.float32),
        b1=jnp.zeros((r,), jnp.float32),
        w2=0.2 * jax.random.normal(ks[7], (in_dim, r), jnp.float32),
        b2=jnp.zeros((in_dim,), jnp.float32),
        # module inits these to torch.zeros(1); use nonzero values so the
        # attention / SE paths actually contribute in this synthetic test.
        gamma_1=jnp.full((1,), 0.5, jnp.float32),
        gamma_2=jnp.full((1,), 0.25, jnp.float32),
    )


# ------------------------------ forward pass ---------------------------------

def spatial_channel_context(xin, p):
    B, C, H_in, W_in = xin.shape
    d = C // 8

    vmem_budget = _tpu_vmem_budget_bytes()
    # bigger query tile where VMEM allows (v5e/v6e), 256 on v7x (64 MiB physical VMEM)
    TQ = 512 if vmem_budget >= 60 * 1024 * 1024 else 256
    NQ = N // TQ

    # AdaptiveAvgPool2d(64) as fixed pooling matrices (glue)
    Ph = _adaptive_pool_matrix(H_in, POOL)
    Pw = _adaptive_pool_matrix(W_in, POOL)
    x_pooled = jnp.einsum('oy,bcyx,px->bcop', Ph, xin, Pw)           # (B, C, 64, 64)
    x_flat = x_pooled.reshape(B, C, N).transpose(0, 2, 1)            # (B, N, C) f32

    wq_b = p['wq'].astype(jnp.bfloat16)
    wk_b = p['wk'].astype(jnp.bfloat16)
    wv_b = p['wv'].astype(jnp.bfloat16)
    bq = p['bq'].reshape(1, d)
    bk = p['bk'].reshape(d, 1)
    bv = p['bv'].reshape(1, C)

    # ---- projection kernel: Q (N,d), K^T (d,N), V (N,C) per batch, bf16 out ----
    proj_grid = pltpu.PrefetchScalarGridSpec(
        num_scalar_prefetch=0,
        grid=(B, N // TP),
        in_specs=[
            pl.BlockSpec((None, TP, C), lambda b, ti: (b, ti, 0)),   # x tile
            pl.BlockSpec((d, C), lambda b, ti: (0, 0)),              # Wq
            pl.BlockSpec((1, d), lambda b, ti: (0, 0)),              # bq
            pl.BlockSpec((d, C), lambda b, ti: (0, 0)),              # Wk
            pl.BlockSpec((d, 1), lambda b, ti: (0, 0)),              # bk
            pl.BlockSpec((C, C), lambda b, ti: (0, 0)),              # Wv
            pl.BlockSpec((1, C), lambda b, ti: (0, 0)),              # bv
        ],
        out_specs=[
            pl.BlockSpec((None, TP, d), lambda b, ti: (b, ti, 0)),   # Q
            pl.BlockSpec((None, d, TP), lambda b, ti: (b, 0, ti)),   # K^T
            pl.BlockSpec((None, TP, C), lambda b, ti: (b, ti, 0)),   # V
        ],
    )
    q_all, kT_all, v_all = pl.pallas_call(
        _proj_kernel,
        out_shape=[jax.ShapeDtypeStruct((B, N, d), jnp.bfloat16),
                   jax.ShapeDtypeStruct((B, d, N), jnp.bfloat16),
                   jax.ShapeDtypeStruct((B, N, C), jnp.bfloat16)],
        grid_spec=proj_grid,
        compiler_params=pltpu.CompilerParams(
            dimension_semantics=("parallel", "parallel"),
            vmem_limit_bytes=vmem_budget),
    )(x_flat, wq_b, bq, wk_b, bk, wv_b, bv)

    # ---- attention kernel: per-query-tile online softmax, both grid axes parallel ----
    attn_grid = pltpu.PrefetchScalarGridSpec(
        num_scalar_prefetch=0,
        grid=(B, NQ),
        in_specs=[
            pl.BlockSpec((None, TQ, C), lambda b, qi: (b, qi, 0)),   # x tile (f32, residual)
            pl.BlockSpec((None, TQ, d), lambda b, qi: (b, qi, 0)),   # Q tile (bf16)
            pl.BlockSpec((None, d, N), lambda b, qi: (b, 0, 0)),     # K^T (bf16, per batch)
            pl.BlockSpec((None, N, C), lambda b, qi: (b, 0, 0)),     # V   (bf16, per batch)
            pl.BlockSpec(memory_space=pltpu.MemorySpace.SMEM),       # gamma_1
        ],
        out_specs=pl.BlockSpec((None, TQ, C), lambda b, qi: (b, qi, 0)),
    )
    s_out_flat = pl.pallas_call(
        _attn_kernel,
        out_shape=jax.ShapeDtypeStruct((B, N, C), jnp.float32),
        grid_spec=attn_grid,
        compiler_params=pltpu.CompilerParams(
            dimension_semantics=("parallel", "parallel"),
            vmem_limit_bytes=vmem_budget),
    )(x_flat, q_all, kT_all, v_all, p['gamma_1'])

    # channel_excitation_x path (tiny): avg_pool over the 64x64 grid + 2-layer MLP + sigmoid
    chn = s_out_flat.mean(axis=1)                                    # (B, C)
    h = jnp.maximum(chn @ p['w1'].T + p['b1'], 0.0)
    se = jax.nn.sigmoid(h @ p['w2'].T + p['b2'])                     # (B, C)

    # ---- SE fusion kernel (HBM-bound elementwise, large tiles) ----
    fuse_grid = pltpu.PrefetchScalarGridSpec(
        num_scalar_prefetch=0,
        grid=(B, N // TF),
        in_specs=[
            pl.BlockSpec((None, TF, C), lambda b, ti: (b, ti, 0)),
            pl.BlockSpec((None, TF, C), lambda b, ti: (b, ti, 0)),
            pl.BlockSpec((None, 1, C), lambda b, ti: (b, 0, 0)),
            pl.BlockSpec(memory_space=pltpu.MemorySpace.SMEM),       # gamma_2
        ],
        out_specs=pl.BlockSpec((None, TF, C), lambda b, ti: (b, ti, 0)),
    )
    feature_flat = pl.pallas_call(
        _fuse_kernel,
        out_shape=jax.ShapeDtypeStruct((B, N, C), jnp.float32),
        grid_spec=fuse_grid,
        compiler_params=pltpu.CompilerParams(
            dimension_semantics=("parallel", "parallel"),
            vmem_limit_bytes=vmem_budget),
    )(x_flat, s_out_flat, se[:, None, :], p['gamma_2'])

    feature = feature_flat.transpose(0, 2, 1).reshape(B, C, POOL, POOL)

    # Module quirk reproduced exactly: it names xin dims (width_in, height_in) =
    # (shape[2], shape[3]) and calls F.interpolate(size=(height_in, width_in)),
    # i.e. target (H, W) = (shape[3], shape[2]).
    H_out, W_out = xin.shape[3], xin.shape[2]
    Mh = _bilinear_matrix(POOL, H_out)
    Mw = _bilinear_matrix(POOL, W_out)
    return jnp.einsum('oy,bcyx,px->bcop', Mh, feature, Mw)


# ------------------------- pure-JAX reference (check) -------------------------

def reference(xin, p):
    B, C, H_in, W_in = xin.shape
    Ph = _adaptive_pool_matrix(H_in, POOL)
    Pw = _adaptive_pool_matrix(W_in, POOL)
    x = jnp.einsum('oy,bcyx,px->bcop', Ph, xin, Pw)
    xf = x.reshape(B, C, N)
    q = jnp.einsum('dc,bcn->bnd', p['wq'], xf) + p['bq']
    k = jnp.einsum('dc,bcn->bdn', p['wk'], xf) + p['bk'][:, None]
    energy = jnp.einsum('bnd,bdm->bnm', q, k)
    attn = jax.nn.softmax(energy, axis=-1)
    v = jnp.einsum('oc,bcn->bon', p['wv'], xf) + p['bv'][:, None]
    s = jnp.einsum('bon,bmn->bom', v, attn).reshape(B, C, POOL, POOL)
    s = x + p['gamma_1'][0] * s
    chn = s.mean(axis=(2, 3))
    se = jax.nn.sigmoid(jnp.maximum(chn @ p['w1'].T + p['b1'], 0.0) @ p['w2'].T + p['b2'])
    feat = x + p['gamma_2'][0] * (s * se[:, :, None, None])
    H_out, W_out = xin.shape[3], xin.shape[2]
    Mh = _bilinear_matrix(POOL, H_out)
    Mw = _bilinear_matrix(POOL, W_out)
    return jnp.einsum('oy,bcyx,px->bcop', Mh, feat, Mw)


if __name__ == "__main__":
    key = jax.random.PRNGKey(0)
    kx, kp = jax.random.split(key)
    B, C, H, W = 2, 32, 16, 16           # in_dim=32 (divisible by 8 and by reduction=16)
    xin = jax.random.normal(kx, (B, C, H, W), jnp.float32)
    params = init_params(kp, C, reduction=16)

    out = jax.block_until_ready(spatial_channel_context(xin, params))
    ref = jax.block_until_ready(reference(xin, params))

    assert out.shape == (B, C, H, W)
    # bf16 MXU path + approximate reciprocal -> relaxed tolerance vs f32 reference
    np.testing.assert_allclose(np.asarray(out), np.asarray(ref), rtol=2e-2, atol=2e-2)
    print("KERNEL_OK")
</pallas_src>

<mosaic_0001>
module attributes {stable_mosaic.version = 11 : i64} {
  func.func @_proj_kernel(%arg0: i32, %arg1: i32, %arg2: memref<1x512x32xf32, #tpu.memory_space<vmem>>, %arg3: memref<4x32xbf16, #tpu.memory_space<vmem>>, %arg4: memref<1x4xf32, #tpu.memory_space<vmem>>, %arg5: memref<4x32xbf16, #tpu.memory_space<vmem>>, %arg6: memref<4x1xf32, #tpu.memory_space<vmem>>, %arg7: memref<32x32xbf16, #tpu.memory_space<vmem>>, %arg8: memref<1x32xf32, #tpu.memory_space<vmem>>, %arg9: memref<1x512x4xbf16, #tpu.memory_space<vmem>>, %arg10: memref<1x4x512xbf16, #tpu.memory_space<vmem>>, %arg11: memref<1x512x32xbf16, #tpu.memory_space<vmem>>) attributes {dimension_semantics = [#tpu.dimension_semantics<parallel>, #tpu.dimension_semantics<parallel>], iteration_bounds = array<i64: 2, 8>, scalar_prefetch = 0 : i64, scratch_operands = 0 : i64, tpu.core_type = #tpu.core_type<tc>, window_params = [{transform_indices = @transform_0, window_bounds = array<i64: 1, 512, 32>}, {pipeline_mode = #tpu.pipeline_mode<synchronous>, transform_indices = @transform_1, window_bounds = array<i64: 4, 32>}, {pipeline_mode = #tpu.pipeline_mode<synchronous>, transform_indices = @transform_2, window_bounds = array<i64: 1, 4>}, {pipeline_mode = #tpu.pipeline_mode<synchronous>, transform_indices = @transform_3, window_bounds = array<i64: 4, 32>}, {pipeline_mode = #tpu.pipeline_mode<synchronous>, transform_indices = @transform_4, window_bounds = array<i64: 4, 1>}, {pipeline_mode = #tpu.pipeline_mode<synchronous>, transform_indices = @transform_5, window_bounds = array<i64: 32, 32>}, {pipeline_mode = #tpu.pipeline_mode<synchronous>, transform_indices = @transform_6, window_bounds = array<i64: 1, 32>}, {transform_indices = @transform_7, window_bounds = array<i64: 1, 512, 4>}, {transform_indices = @transform_8, window_bounds = array<i64: 1, 4, 512>}, {transform_indices = @transform_9, window_bounds = array<i64: 1, 512, 32>}]} {
    %c0 = arith.constant 0 : index
    %c0_0 = arith.constant 0 : index
    %c0_1 = arith.constant 0 : index
    %0 = vector.load %arg2[%c0, %c0_0, %c0_1] : memref<1x512x32xf32, #tpu.memory_space<vmem>>, vector<1x512x32xf32>
    %1 = vector.shape_cast %0 : vector<1x512x32xf32> to vector<512x32xf32>
    %2 = arith.truncf %1 : vector<512x32xf32> to vector<512x32xbf16>
    %c0_2 = arith.constant 0 : index
    %c0_3 = arith.constant 0 : index
    %3 = vector.load %arg3[%c0_2, %c0_3] : memref<4x32xbf16, #tpu.memory_space<vmem>>, vector<4x32xbf16>
    %cst = arith.constant dense<0.000000e+00> : vector<512x4xf32>
    %4 = tpu.matmul %2, %3, %cst {dimension_numbers = #tpu.dot_dimension_numbers<[1], [1], [0], [0], [0, 0, 1, 0], [], []>} : vector<512x32xbf16>, vector<4x32xbf16>, vector<512x4xf32> -> vector<512x4xf32>
    %c0_4 = arith.constant 0 : index
    %c0_5 = arith.constant 0 : index
    %5 = vector.load %arg4[%c0_4, %c0_5] : memref<1x4xf32, #tpu.memory_space<vmem>>, vector<1x4xf32>
    %6 = vector.broadcast %5 : vector<1x4xf32> to vector<512x4xf32>
    %7 = arith.addf %4, %6 : vector<512x4xf32>
    %c0_6 = arith.constant 0 : index
    %c0_7 = arith.constant 0 : index
    %8 = vector.load %arg5[%c0_6, %c0_7] : memref<4x32xbf16, #tpu.memory_space<vmem>>, vector<4x32xbf16>
    %cst_8 = arith.constant dense<0.000000e+00> : vector<4x512xf32>
    %9 = tpu.matmul %8, %2, %cst_8 {dimension_numbers = #tpu.dot_dimension_numbers<[1], [1], [0], [0], [0, 0, 1, 0], [], []>} : vector<4x32xbf16>, vector<512x32xbf16>, vector<4x512xf32> -> vector<4x512xf32>
    %c0_9 = arith.constant 0 : index
    %c0_10 = arith.constant 0 : index
    %10 = vector.load %arg6[%c0_9, %c0_10] : memref<4x1xf32, #tpu.memory_space<vmem>>, vector<4x1xf32>
    %11 = vector.broadcast %10 : vector<4x1xf32> to vector<4x512xf32>
    %12 = arith.addf %9, %11 : vector<4x512xf32>
    %c0_11 = arith.constant 0 : index
    %c0_12 = arith.constant 0 : index
    %13 = vector.load %arg7[%c0_11, %c0_12] : memref<32x32xbf16, #tpu.memory_space<vmem>>, vector<32x32xbf16>
    %cst_13 = arith.constant dense<0.000000e+00> : vector<512x32xf32>
    %14 = tpu.matmul %2, %13, %cst_13 {dimension_numbers = #tpu.dot_dimension_numbers<[1], [1], [0], [0], [0, 0, 1, 0], [], []>} : vector<512x32xbf16>, vector<32x32xbf16>, vector<512x32xf32> -> vector<512x32xf32>
    %c0_14 = arith.constant 0 : index
    %c0_15 = arith.constant 0 : index
    %15 = vector.load %arg8[%c0_14, %c0_15] : memref<1x32xf32, #tpu.memory_space<vmem>>, vector<1x32xf32>
    %16 = vector.broadcast %15 : vector<1x32xf32> to vector<512x32xf32>
    %17 = arith.addf %14, %16 : vector<512x32xf32>
    %18 = arith.truncf %7 : vector<512x4xf32> to vector<512x4xbf16>
    %c0_16 = arith.constant 0 : index
    %c0_17 = arith.constant 0 : index
    %c0_18 = arith.constant 0 : index
    %19 = vector.load %arg9[%c0_16, %c0_17, %c0_18] : memref<1x512x4xbf16, #tpu.memory_space<vmem>>, vector<1x512x4xbf16>
    %20 = vector.shape_cast %19 : vector<1x512x4xbf16> to vector<512x4xbf16>
    %21 = vector.shape_cast %18 : vector<512x4xbf16> to vector<1x512x4xbf16>
    tpu.vector_store %arg9[%c0_16, %c0_17, %c0_18], %21 {strides = array<i32>} : memref<1x512x4xbf16, #tpu.memory_space<vmem>>, vector<1x512x4xbf16>,
    %22 = arith.truncf %12 : vector<4x512xf32> to vector<4x512xbf16>
    %c0_19 = arith.constant 0 : index
    %c0_20 = arith.constant 0 : index
    %c0_21 = arith.constant 0 : index
    %23 = vector.load %arg10[%c0_19, %c0_20, %c0_21] : memref<1x4x512xbf16, #tpu.memory_space<vmem>>, vector<1x4x512xbf16>
    %24 = vector.shape_cast %23 : vector<1x4x512xbf16> to vector<4x512xbf16>
    %25 = vector.shape_cast %22 : vector<4x512xbf16> to vector<1x4x512xbf16>
    tpu.vector_store %arg10[%c0_19, %c0_20, %c0_21], %25 {strides = array<i32>} : memref<1x4x512xbf16, #tpu.memory_space<vmem>>, vector<1x4x512xbf16>,
    %26 = arith.truncf %17 : vector<512x32xf32> to vector<512x32xbf16>
    %c0_22 = arith.constant 0 : index
    %c0_23 = arith.constant 0 : index
    %c0_24 = arith.constant 0 : index
    %27 = vector.load %arg11[%c0_22, %c0_23, %c0_24] : memref<1x512x32xbf16, #tpu.memory_space<vmem>>, vector<1x512x32xbf16>
    %28 = vector.shape_cast %27 : vector<1x512x32xbf16> to vector<512x32xbf16>
    %29 = vector.shape_cast %26 : vector<512x32xbf16> to vector<1x512x32xbf16>
    tpu.vector_store %arg11[%c0_22, %c0_23, %c0_24], %29 {strides = array<i32>} : memref<1x512x32xbf16, #tpu.memory_space<vmem>>, vector<1x512x32xbf16>,
    return
  }
  func.func @transform_0(%arg0: i32, %arg1: i32) -> (i32, i32, i32) {
    %c0_i32 = arith.constant 0 : i32
    %c0_i32_0 = arith.constant 0 : i32
    return %arg0, %arg1, %c0_i32 : i32, i32, i32
  }
  func.func @transform_1(%arg0: i32, %arg1: i32) -> (i32, i32) {
    %c0_i32 = arith.constant 0 : i32
    %c0_i32_0 = arith.constant 0 : i32
    %c0_i32_1 = arith.constant 0 : i32
    return %c0_i32, %c0_i32_0 : i32, i32
  }
  func.func @transform_2(%arg0: i32, %arg1: i32) -> (i32, i32) {
    %c0_i32 = arith.constant 0 : i32
    %c0_i32_0 = arith.constant 0 : i32
    %c0_i32_1 = arith.constant 0 : i32
    return %c0_i32, %c0_i32_0 : i32, i32
  }
  func.func @transform_3(%arg0: i32, %arg1: i32) -> (i32, i32) {
    %c0_i32 = arith.constant 0 : i32
    %c0_i32_0 = arith.constant 0 : i32
    %c0_i32_1 = arith.constant 0 : i32
    return %c0_i32, %c0_i32_0 : i32, i32
  }
  func.func @transform_4(%arg0: i32, %arg1: i32) -> (i32, i32) {
    %c0_i32 = arith.constant 0 : i32
    %c0_i32_0 = arith.constant 0 : i32
    %c0_i32_1 = arith.constant 0 : i32
    return %c0_i32, %c0_i32_0 : i32, i32
  }
  func.func @transform_5(%arg0: i32, %arg1: i32) -> (i32, i32) {
    %c0_i32 = arith.constant 0 : i32
    %c0_i32_0 = arith.constant 0 : i32
    %c0_i32_1 = arith.constant 0 : i32
    return %c0_i32, %c0_i32_0 : i32, i32
  }
  func.func @transform_6(%arg0: i32, %arg1: i32) -> (i32, i32) {
    %c0_i32 = arith.constant 0 : i32
    %c0_i32_0 = arith.constant 0 : i32
    %c0_i32_1 = arith.constant 0 : i32
    return %c0_i32, %c0_i32_0 : i32, i32
  }
  func.func @transform_7(%arg0: i32, %arg1: i32) -> (i32, i32, i32) {
    %c0_i32 = arith.constant 0 : i32
    %c0_i32_0 = arith.constant 0 : i32
    return %arg0, %arg1, %c0_i32 : i32, i32, i32
  }
  func.func @transform_8(%arg0: i32, %arg1: i32) -> (i32, i32, i32) {
    %c0_i32 = arith.constant 0 : i32
    %c0_i32_0 = arith.constant 0 : i32
    return %arg0, %c0_i32, %arg1 : i32, i32, i32
  }
  func.func @transform_9(%arg0: i32, %arg1: i32) -> (i32, i32, i32) {
    %c0_i32 = arith.constant 0 : i32
    %c0_i32_0 = arith.constant 0 : i32
    return %arg0, %arg1, %c0_i32 : i32, i32, i32
  }
}

</mosaic_0001>

<llo_original>
// kernel: tpu_custom_call.1
$region0: #{tpu_custom_call.1}
  #allocation0 [shape = 'u32[]', space=smem, size = 0x4, offset = 0x4, fixed_abs, tag = 'smem constant byte address 0x4 - core index']
  #allocation1 [shape = 'u32[72,128]{1,0:T(1,128)}', space=vmem, size = 0x9000, scoped, tag = 'internal scratch']
  %s0 = inlined_call_operand.vmem [shape: f32[2,4096,32], index: 0, kind: input, shape index: {}]
  %s1 = inlined_call_operand.vmem [shape: bf16[4,32], index: 1, kind: input, shape index: {}]
  %s2 = inlined_call_operand.vmem [shape: f32[1,4], index: 2, kind: input, shape index: {}]
  %s3 = inlined_call_operand.vmem [shape: bf16[4,32], index: 3, kind: input, shape index: {}]
  %s4 = inlined_call_operand.vmem [shape: f32[4,1], index: 4, kind: input, shape index: {}]
  %s5 = inlined_call_operand.vmem [shape: bf16[32,32], index: 5, kind: input, shape index: {}]
  %s6 = inlined_call_operand.vmem [shape: f32[1,32], index: 6, kind: input, shape index: {}]
  %s7 = inlined_call_operand.vmem [shape: bf16[2,4096,4], index: 7, kind: output, shape index: {0}]
  %s8 = inlined_call_operand.hbm [shape: bf16[2,4,4096], index: 8, kind: output, shape index: {1}]
  %s9 = inlined_call_operand.vmem [shape: bf16[2,4096,32], index: 9, kind: output, shape index: {2}]
  %10 = xla_tuple %s7, %s8, %s9
  %s11 = sld [smem:[#allocation0]]
  $region77: #{tpu_custom_call.1} parent=0
    _
  %s13 = ssub.s32 1, %s11
  %s14 = scalar_select 0, %s13, %s11
  $region1: #{tpu_custom_call.1} parent=0
    #allocation2 [shape = 'u8[8192]{0}', space=vmem, size = 0x2000, scoped, tag = 'output window, operand 1']
    #allocation3 [shape = 's32[2]{0}', space=sflag, size = 0x8, scoped, tag = 'scoped memory for tpu_custom_call.1']
    %15 = vsyncpa [#allocation3], 0
    %s16 = scalar_lea.sflag [#allocation3], 1
    %17 = vsyncpa %s16, 0
    loop: start=0, step=1, limit=18
    $region2: #{tpu_custom_call.1} parent=1 // loop_pre_header
      _
    $region3: #{tpu_custom_call.1} parent=1 // loop_header
      %s19 = sphi 0, %s23
      %p20 = scmp.ge.s32.totalorder %s19, 18
      %s26 = sphi 0, %s38
      %s27 = sphi 0, %s34
      %s28 = sphi 0, %s26
      %s29 = sphi 0, %s27
      %s30 = sphi 0, %s28
      %s31 = sphi 0, %s29
      %s43 = sphi 0, %s45
      %s46 = sphi 0, %s43
      %s47 = sphi 0, %s46
      %s63 = sphi 0, %s47
      %s67 = sphi 0, %s67
      %s69 = sphi 0, %s67
      %s70 = sphi 0, %s69
      %s84 = sphi 0, %s70
      %s88 = sphi 0, %s88
      %s90 = sphi 0, %s88
      %s91 = sphi 0, %s90
      %s105 = sphi 0, %s91
      %s109 = sphi 0, %s109
      %s111 = sphi 0, %s109
      %s112 = sphi 0, %s111
      %s126 = sphi 0, %s112
      %s130 = sphi 0, %s130
      %s132 = sphi 0, %s130
      %s133 = sphi 0, %s132
      %s147 = sphi 0, %s133
      %s151 = sphi 0, %s151
      %s153 = sphi 0, %s151
      %s154 = sphi 0, %s153
      %s168 = sphi 0, %s154
      %s172 = sphi 0, %s172
      %s174 = sphi 0, %s172
      %s175 = sphi 0, %s174
      %s189 = sphi 0, %s175
      %s197 = sphi 0, %s199
      %s200 = sphi 0, %s197
      %s201 = sphi 0, %s200
      %s217 = sphi 0, %s201
      %s225 = sphi 0, %s227
      %s228 = sphi 0, %s225
      %s229 = sphi 0, %s228
      %s245 = sphi 0, %s229
      %s253 = sphi 0, %s255
      %s256 = sphi 0, %s253
      %s257 = sphi 0, %s256
      %s273 = sphi 0, %s257
    $region4: #{tpu_custom_call.1} parent=1 // loop_header_branch
      %22 = sbr.rel (%p20) target = $region8
    $region5: #{tpu_custom_call.1} parent=1 // loop_body
      %s24 = ssub.s32 %s19, 1
      %s25 = ssub.s32 %s19, 2
      %s32 = sadd.s32 1, %s27
      %p33 = scmp.ge.s32.totalorder %s32, 8
      %s34 = scalar_select %p33, 0, %s32
      %s35 = sadd.s32 1, %s26
      %s36 = scalar_select %p33, %s35, %s26
      %p37 = scmp.ge.s32.totalorder %s36, 2
      %s38 = scalar_select %p37, 0, %s36
      %s39 = ssub.s32 %s26, %s38
      %s40 = ssub.s32 %s27, %s34
      %s41 = sor.u32 %s39, %s40
      %p42 = scmp.eq.s32.totalorder %s41, 0
      %s44 = sadd.s32 %s43, 1
      %s45 = scalar_select %p42, %s43, %s44
      %p48 = pneg %p42
      %p49 = scmp.eq.s32.totalorder %s19, 15
      %p50 = por %p48, %p49
      %p51 = scmp.ne.s32.totalorder %s43, %s46
      %p52 = scmp.eq.s32.totalorder %s19, 0
      %p53 = por %p51, %p52
      %p54 = scmp.ne.s32.totalorder %s43, %s46
      %p55 = scmp.eq.s32.totalorder %s24, 15
      %p56 = por %p54, %p55
      %p57 = scmp.ne.s32.totalorder %s46, %s47
      %p58 = scmp.eq.s32.totalorder %s24, 0
      %p59 = por %p57, %p58
      %p60 = scmp.ne.s32.totalorder %s46, %s47
      %p61 = scmp.eq.s32.totalorder %s25, 15
      %p62 = por %p60, %p61
      %p64 = scmp.ne.s32.totalorder %s47, %s63
      %p65 = scmp.eq.s32.totalorder %s25, 0
      %p66 = por %p64, %p65
      %s68 = sadd.s32 %s67, 1
      %p71 = scmp.eq.s32.totalorder %s19, 15
      %p72 = scmp.ne.s32.totalorder %s67, %s69
      %p73 = scmp.eq.s32.totalorder %s19, 0
      %p74 = por %p72, %p73
      %p75 = scmp.ne.s32.totalorder %s67, %s69
      %p76 = scmp.eq.s32.totalorder %s24, 15
      %p77 = por %p75, %p76
      %p78 = scmp.ne.s32.totalorder %s69, %s70
      %p79 = scmp.eq.s32.totalorder %s24, 0
      %p80 = por %p78, %p79
      %p81 = scmp.ne.s32.totalorder %s69, %s70
      %p82 = scmp.eq.s32.totalorder %s25, 15
      %p83 = por %p81, %p82
      %p85 = scmp.ne.s32.totalorder %s70, %s84
      %p86 = scmp.eq.s32.totalorder %s25, 0
      %p87 = por %p85, %p86
      %s89 = sadd.s32 %s88, 1
      %p92 = scmp.eq.s32.totalorder %s19, 15
      %p93 = scmp.ne.s32.totalorder %s88, %s90
      %p94 = scmp.eq.s32.totalorder %s19, 0
      %p95 = por %p93, %p94
      %p96 = scmp.ne.s32.totalorder %s88, %s90
      %p97 = scmp.eq.s32.totalorder %s24, 15
      %p98 = por %p96, %p97
      %p99 = scmp.ne.s32.totalorder %s90, %s91
      %p100 = scmp.eq.s32.totalorder %s24, 0
      %p101 = por %p99, %p100
      %p102 = scmp.ne.s32.totalorder %s90, %s91
      %p103 = scmp.eq.s32.totalorder %s25, 15
      %p104 = por %p102, %p103
      %p106 = scmp.ne.s32.totalorder %s91, %s105
      %p107 = scmp.eq.s32.totalorder %s25, 0
      %p108 = por %p106, %p107
      %s110 = sadd.s32 %s109, 1
      %p113 = scmp.eq.s32.totalorder %s19, 15
      %p114 = scmp.ne.s32.totalorder %s109, %s111
      %p115 = scmp.eq.s32.totalorder %s19, 0
      %p116 = por %p114, %p115
      %p117 = scmp.ne.s32.totalorder %s109, %s111
      %p118 = scmp.eq.s32.totalorder %s24, 15
      %p119 = por %p117, %p118
      %p120 = scmp.ne.s32.totalorder %s111, %s112
      %p121 = scmp.eq.s32.totalorder %s24, 0
      %p122 = por %p120, %p121
      %p123 = scmp.ne.s32.totalorder %s111, %s112
      %p124 = scmp.eq.s32.totalorder %s25, 15
      %p125 = por %p123, %p124
      %p127 = scmp.ne.s32.totalorder %s112, %s126
      %p128 = scmp.eq.s32.totalorder %s25, 0
      %p129 = por %p127, %p128
      %s131 = sadd.s32 %s130, 1
      %p134 = scmp.eq.s32.totalorder %s19, 15
      %p135 = scmp.ne.s32.totalorder %s130, %s132
      %p136 = scmp.eq.s32.totalorder %s19, 0
      %p137 = por %p135, %p136
      %p138 = scmp.ne.s32.totalorder %s130, %s132
      %p139 = scmp.eq.s32.totalorder %s24, 15
      %p140 = por %p138, %p139
      %p141 = scmp.ne.s32.totalorder %s132, %s133
      %p142 = scmp.eq.s32.totalorder %s24, 0
      %p143 = por %p141, %p142
      %p144 = scmp.ne.s32.totalorder %s132, %s133
      %p145 = scmp.eq.s32.totalorder %s25, 15
      %p146 = por %p144, %p145
      %p148 = scmp.ne.s32.totalorder %s133, %s147
      %p149 = scmp.eq.s32.totalorder %s25, 0
      %p150 = por %p148, %p149
      %s152 = sadd.s32 %s151, 1
      %p155 = scmp.eq.s32.totalorder %s19, 15
      %p156 = scmp.ne.s32.totalorder %s151, %s153
      %p157 = scmp.eq.s32.totalorder %s19, 0
      %p158 = por %p156, %p157
      %p159 = scmp.ne.s32.totalorder %s151, %s153
      %p160 = scmp.eq.s32.totalorder %s24, 15
      %p161 = por %p159, %p160
      %p162 = scmp.ne.s32.totalorder %s153, %s154
      %p163 = scmp.eq.s32.totalorder %s24, 0
      %p164 = por %p162, %p163
      %p165 = scmp.ne.s32.totalorder %s153, %s154
      %p166 = scmp.eq.s32.totalorder %s25, 15
      %p167 = por %p165, %p166
      %p169 = scmp.ne.s32.totalorder %s154, %s168
      %p170 = scmp.eq.s32.totalorder %s25, 0
      %p171 = por %p169, %p170
      %s173 = sadd.s32 %s172, 1
      %p176 = scmp.eq.s32.totalorder %s19, 15
      %p177 = scmp.ne.s32.totalorder %s172, %s174
      %p178 = scmp.eq.s32.totalorder %s19, 0
      %p179 = por %p177, %p178
      %p180 = scmp.ne.s32.totalorder %s172, %s174
      %p181 = scmp.eq.s32.totalorder %s24, 15
      %p182 = por %p180, %p181
      %p183 = scmp.ne.s32.totalorder %s174, %s175
      %p184 = scmp.eq.s32.totalorder %s24, 0
      %p185 = por %p183, %p184
      %p186 = scmp.ne.s32.totalorder %s174, %s175
      %p187 = scmp.eq.s32.totalorder %s25, 15
      %p188 = por %p186, %p187
      %p190 = scmp.ne.s32.totalorder %s175, %s189
      %p191 = scmp.eq.s32.totalorder %s25, 0
      %p192 = por %p190, %p191
      %s193 = ssub.s32 %s26, %s38
      %s194 = ssub.s32 %s27, %s34
      %s195 = sor.u32 %s193, %s194
      %p196 = scmp.eq.s32.totalorder %s195, 0
      %s198 = sadd.s32 %s197, 1
      %s199 = scalar_select %p196, %s197, %s198
      %p202 = pneg %p196
      %p203 = scmp.eq.s32.totalorder %s19, 15
      %p204 = por %p202, %p203
      %p205 = scmp.ne.s32.totalorder %s197, %s200
      %p206 = scmp.eq.s32.totalorder %s19, 0
      %p207 = por %p205, %p206
      %p208 = scmp.ne.s32.totalorder %s197, %s200
      %p209 = scmp.eq.s32.totalorder %s24, 15
      %p210 = por %p208, %p209
      %p211 = scmp.ne.s32.totalorder %s200, %s201
      %p212 = scmp.eq.s32.totalorder %s24, 0
      %p213 = por %p211, %p212
      %p214 = scmp.ne.s32.totalorder %s200, %s201
      %p215 = scmp.eq.s32.totalorder %s25, 15
      %p216 = por %p214, %p215
      %p218 = scmp.ne.s32.totalorder %s201, %s217
      %p219 = scmp.eq.s32.totalorder %s25, 0
      %p220 = por %p218, %p219
      %s221 = ssub.s32 %s26, %s38
      %s222 = ssub.s32 %s27, %s34
      %s223 = sor.u32 %s221, %s222
      %p224 = scmp.eq.s32.totalorder %s223, 0
      %s226 = sadd.s32 %s225, 1
      %s227 = scalar_select %p224, %s225, %s226
      %p230 = pneg %p224
      %p231 = scmp.eq.s32.totalorder %s19, 15
      %p232 = por %p230, %p231
      %p233 = scmp.ne.s32.totalorder %s225, %s228
      %p234 = scmp.eq.s32.totalorder %s19, 0
      %p235 = por %p233, %p234
      %p236 = scmp.ne.s32.totalorder %s225, %s228
      %p237 = scmp.eq.s32.totalorder %s24, 15
      %p238 = por %p236, %p237
      %p239 = scmp.ne.s32.totalorder %s228, %s229
      %p240 = scmp.eq.s32.totalorder %s24, 0
      %p241 = por %p239, %p240
      %p242 = scmp.ne.s32.totalorder %s228, %s229
      %p243 = scmp.eq.s32.totalorder %s25, 15
      %p244 = por %p242, %p243
      %p246 = scmp.ne.s32.totalorder %s229, %s245
      %p247 = scmp.eq.s32.totalorder %s25, 0
      %p248 = por %p246, %p247
      %s249 = ssub.s32 %s26, %s38
      %s250 = ssub.s32 %s27, %s34
      %s251 = sor.u32 %s249, %s250
      %p252 = scmp.eq.s32.totalorder %s251, 0
      %s254 = sadd.s32 %s253, 1
      %s255 = scalar_select %p252, %s253, %s254
      %p258 = pneg %p252
      %p259 = scmp.eq.s32.totalorder %s19, 15
      %p260 = por %p258, %p259
      %p261 = scmp.ne.s32.totalorder %s253, %s256
      %p262 = scmp.eq.s32.totalorder %s19, 0
      %p263 = por %p261, %p262
      %p264 = scmp.ne.s32.totalorder %s253, %s256
      %p265 = scmp.eq.s32.totalorder %s24, 15
      %p266 = por %p264, %p265
      %p267 = scmp.ne.s32.totalorder %s256, %s257
      %p268 = scmp.eq.s32.totalorder %s24, 0
      %p269 = por %p267, %p268
      %p270 = scmp.ne.s32.totalorder %s256, %s257
      %p271 = scmp.eq.s32.totalorder %s25, 15
      %p272 = por %p270, %p271
      %p274 = scmp.ne.s32.totalorder %s257, %s273
      %p275 = scmp.eq.s32.totalorder %s25, 0
      %p276 = por %p274, %p275
      %p277 = scmp.le.s32.totalorder 1, %s19
      %p278 = scmp.lt.s32.totalorder %s19, 17
      %p279 = pnand %p277, %p278
      %p280 = pneg %p279
      // Predicated region
      $region9: #{tpu_custom_call.1} parent=5 // pred_check
        _
      $region10: #{tpu_custom_call.1} parent=5 // pred_check_branch
        %282 = sbr.rel (%p279) target = $region12
      $region11: #{tpu_custom_call.1} parent=5 // pred_region
        %s283 = ssub.s32 %s19, 1
        // Predicated region
        $region13: #{tpu_custom_call.1} parent=11 // pred_check
          %p284 = pneg %p80
        $region14: #{tpu_custom_call.1} parent=11 // pred_check_branch
          %286 = sbr.rel (%p284) target = $region16
        $region15: #{tpu_custom_call.1} parent=11 // pred_region
          _
        $region16: #{tpu_custom_call.1} parent=11 // pred_fallthru
          _
        // Predicated region
        $region17: #{tpu_custom_call.1} parent=11 // pred_check
          %p287 = pneg %p101
        $region18: #{tpu_custom_call.1} parent=11 // pred_check_branch
          %289 = sbr.rel (%p287) target = $region20
        $region19: #{tpu_custom_call.1} parent=11 // pred_region
          _
        $region20: #{tpu_custom_call.1} parent=11 // pred_fallthru
          _
        // Predicated region
        $region21: #{tpu_custom_call.1} parent=11 // pred_check
          %p290 = pneg %p122
        $region22: #{tpu_custom_call.1} parent=11 // pred_check_branch
          %292 = sbr.rel (%p290) target = $region24
        $region23: #{tpu_custom_call.1} parent=11 // pred_region
          _
        $region24: #{tpu_custom_call.1} parent=11 // pred_fallthru
          _
        // Predicated region
        $region25: #{tpu_custom_call.1} parent=11 // pred_check
          %p293 = pneg %p143
        $region26: #{tpu_custom_call.1} parent=11 // pred_check_branch
          %295 = sbr.rel (%p293) target = $region28
        $region27: #{tpu_custom_call.1} parent=11 // pred_region
          _
        $region28: #{tpu_custom_call.1} parent=11 // pred_fallthru
          _
        // Predicated region
        $region29: #{tpu_custom_call.1} parent=11 // pred_check
          %p296 = pneg %p164
        $region30: #{tpu_custom_call.1} parent=11 // pred_check_branch
          %298 = sbr.rel (%p296) target = $region32
        $region31: #{tpu_custom_call.1} parent=11 // pred_region
          _
        $region32: #{tpu_custom_call.1} parent=11 // pred_fallthru
          _
        // Predicated region
        $region33: #{tpu_custom_call.1} parent=11 // pred_check
          %p299 = pneg %p185
        $region34: #{tpu_custom_call.1} parent=11 // pred_check_branch
          %301 = sbr.rel (%p299) target = $region36
        $region35: #{tpu_custom_call.1} parent=11 // pred_region
          _
        $region36: #{tpu_custom_call.1} parent=11 // pred_fallthru
          _
      $region12: #{tpu_custom_call.1} parent=5 // pred_fallthru
        _
      %p302 = scmp.lt.s32.totalorder %s19, 16
      // Predicated region
      $region37: #{tpu_custom_call.1} parent=5 // pred_check
        %p303 = pneg %p302
      $region38: #{tpu_custom_call.1} parent=5 // pred_check_branch
        %305 = sbr.rel (%p303) target = $region40
      $region39: #{tpu_custom_call.1} parent=5 // pred_region
        // Predicated region
        $region41: #{tpu_custom_call.1} parent=39 // pred_check
          %p306 = pneg %p53
        $region42: #{tpu_custom_call.1} parent=39 // pred_check_branch
          %308 = sbr.rel (%p306) target = $region44
        $region43: #{tpu_custom_call.1} parent=39 // pred_region
          %s309 = smul.u32 64, %s27
          %p310 = scmp.lt.s32.totalorder %s26, 1
          %s311 = scalar_select %p310, %s26, 1
          %p312 = scmp.lt.s32.totalorder %s309, 511
          %s313 = scalar_select %p312, %s309, 511
          %s314 = smul.addr %s311, 512
          %s315 = sadd.s32 %s313, %s314
          %s316 = smul.addr %s315, 8
          %s317 = scalar_lea.vmem %s0, %s316
          %s318 = smul.u32 64, %s27
        $region44: #{tpu_custom_call.1} parent=39 // pred_fallthru
          _
      $region40: #{tpu_custom_call.1} parent=5 // pred_fallthru
        _
      %p319 = scmp.le.s32.totalorder 1, %s19
      %p320 = scmp.lt.s32.totalorder %s19, 17
      %p321 = pnand %p319, %p320
      %p322 = pneg %p321
      // Predicated region
      $region45: #{tpu_custom_call.1} parent=5 // pred_check
        _
      $region46: #{tpu_custom_call.1} parent=5 // pred_check_branch
        %324 = sbr.rel (%p321) target = $region48
      $region47: #{tpu_custom_call.1} parent=5 // pred_region
        %s325 = ssub.s32 %s19, 1
        %s326 = smul.u32 64, %s29
        %p327 = scmp.lt.s32.totalorder %s28, 1
        %s328 = scalar_select %p327, %s28, 1
        %p329 = scmp.lt.s32.totalorder %s326, 511
        %s330 = scalar_select %p329, %s326, 511
        %s331 = smul.addr %s328, 512
        %s332 = sadd.s32 %s330, %s331
        %s333 = smul.addr %s332, 8
        %s334 = scalar_lea.vmem %s0, %s333
        %p335 = pneg %p59
        %p336 = pneg %p56
        %p337 = pneg %p80
        %p338 = pneg %p77
        %p339 = pneg %p101
        %p340 = pneg %p98
        %p341 = pneg %p122
        %p342 = pneg %p119
        %p343 = pneg %p143
        %p344 = pneg %p140
        %p345 = pneg %p164
        %p346 = pneg %p161
        %p347 = pneg %p185
        %p348 = pneg %p182
        %p349 = pneg %p213
        %p350 = pneg %p210
        %s351 = smul.u32 64, %s29
        %p352 = scmp.lt.s32.totalorder %s28, 1
        %s353 = scalar_select %p352, %s28, 1
        %p354 = scmp.lt.s32.totalorder %s351, 511
        %s355 = scalar_select %p354, %s351, 511
        %s356 = smul.addr %s353, 512
        %s357 = sadd.s32 %s355, %s356
        %s358 = smul.addr %s357, 4
        %s359 = scalar_lea.vmem %s7, %s358
        %p360 = pneg %p241
        %p361 = pneg %p238
        %s362 = sand.u32 %s228, 1
        %s363 = scalar_lea.sflag [#allocation3], %s362
        %s364 = sand.u32 %s228, 1
        %s365 = smul.addr %s364, 8
        %s366 = scalar_lea.vmem [#allocation2], %s365
        %p367 = pneg %p269
        %p368 = pneg %p266
        %s369 = smul.u32 64, %s29
        %p370 = scmp.lt.s32.totalorder %s28, 1
        %s371 = scalar_select %p370, %s28, 1
        %p372 = scmp.lt.s32.totalorder %s369, 511
        %s373 = scalar_select %p372, %s369, 511
        %s374 = smul.addr %s371, 512
        %s375 = sadd.s32 %s373, %s374
        %s376 = smul.addr %s375, 4
        %s377 = scalar_lea.vmem %s9, %s376
        %s378 = smul.u32 64, %s29
        %p379 = scmp.lt.s32.totalorder %s28, 1
        %s380 = scalar_select %p379, %s28, 1
        %p381 = scmp.lt.s32.totalorder %s378, 511
        %s382 = scalar_select %p381, %s378, 511
        %s383 = smul.addr %s380, 512
        %s384 = sadd.s32 %s382, %s383
        %s385 = smul.addr %s384, 8
        %s386 = scalar_lea.vmem %s0, %s385
        %s387 = smul.u32 64, %s29
        %s388 = smul.u32 64, %s29
        %p389 = scmp.lt.s32.totalorder %s28, 1
        %s390 = scalar_select %p389, %s28, 1
        %p391 = scmp.lt.s32.totalorder %s388, 511
        %s392 = scalar_select %p391, %s388, 511
        %s393 = smul.addr %s390, 512
        %s394 = sadd.s32 %s392, %s393
        %s395 = smul.addr %s394, 4
        %s396 = scalar_lea.vmem %s7, %s395
        %s397 = smul.u32 64, %s29
        %s398 = smul.u32 4, %s29
        %s399 = smul.u32 64, %s29
        %p400 = scmp.lt.s32.totalorder %s28, 1
        %s401 = scalar_select %p400, %s28, 1
        %p402 = scmp.lt.s32.totalorder %s399, 511
        %s403 = scalar_select %p402, %s399, 511
        %s404 = smul.addr %s401, 512
        %s405 = sadd.s32 %s403, %s404
        %s406 = smul.addr %s405, 4
        %s407 = scalar_lea.vmem %s9, %s406
        %s408 = smul.u32 64, %s29
        %v410 = vld [vmem:[%s386] sm:$0xff]
        %v411 = vld [vmem:[%s386 + $0x8] sm:$0xff]
        %v412 = vld [vmem:[%s386 + $0x10] sm:$0xff]
        %v413 = vld [vmem:[%s386 + $0x18] sm:$0xff]
        %v414 = vld [vmem:[%s386 + $0x20] sm:$0xff]
        %v415 = vld [vmem:[%s386 + $0x28] sm:$0xff]
        %v416 = vld [vmem:[%s386 + $0x30] sm:$0xff]
        %v417 = vld [vmem:[%s386 + $0x38] sm:$0xff]
        %v418 = vld [vmem:[%s386 + $0x40] sm:$0xff]
        %v419 = vld [vmem:[%s386 + $0x48] sm:$0xff]
        %v420 = vld [vmem:[%s386 + $0x50] sm:$0xff]
        %v421 = vld [vmem:[%s386 + $0x58] sm:$0xff]
        %v422 = vld [vmem:[%s386 + $0x60] sm:$0xff]
        %v423 = vld [vmem:[%s386 + $0x68] sm:$0xff]
        %v424 = vld [vmem:[%s386 + $0x70] sm:$0xff]
        %v425 = vld [vmem:[%s386 + $0x78] sm:$0xff]
        %v426 = vld [vmem:[%s386 + $0x80] sm:$0xff]
        %v427 = vld [vmem:[%s386 + $0x88] sm:$0xff]
        %v428 = vld [vmem:[%s386 + $0x90] sm:$0xff]
        %v429 = vld [vmem:[%s386 + $0x98] sm:$0xff]
        %v430 = vld [vmem:[%s386 + $0xa0] sm:$0xff]
        %v431 = vld [vmem:[%s386 + $0xa8] sm:$0xff]
        %v432 = vld [vmem:[%s386 + $0xb0] sm:$0xff]
        %v433 = vld [vmem:[%s386 + $0xb8] sm:$0xff]
        %v434 = vld [vmem:[%s386 + $0xc0] sm:$0xff]
        %v435 = vld [vmem:[%s386 + $0xc8] sm:$0xff]
        %v436 = vld [vmem:[%s386 + $0xd0] sm:$0xff]
        %v437 = vld [vmem:[%s386 + $0xd8] sm:$0xff]
        %v438 = vld [vmem:[%s386 + $0xe0] sm:$0xff]
        %v439 = vld [vmem:[%s386 + $0xe8] sm:$0xff]
        %v440 = vld [vmem:[%s386 + $0xf0] sm:$0xff]
        %v441 = vld [vmem:[%s386 + $0xf8] sm:$0xff]
        %v442 = vld [vmem:[%s386 + $0x100] sm:$0xff]
        %v443 = vld [vmem:[%s386 + $0x108] sm:$0xff]
        %v444 = vld [vmem:[%s386 + $0x110] sm:$0xff]
        %v445 = vld [vmem:[%s386 + $0x118] sm:$0xff]
        %v446 = vld [vmem:[%s386 + $0x120] sm:$0xff]
        %v447 = vld [vmem:[%s386 + $0x128] sm:$0xff]
        %v448 = vld [vmem:[%s386 + $0x130] sm:$0xff]
        %v449 = vld [vmem:[%s386 + $0x138] sm:$0xff]
        %v450 = vld [vmem:[%s386 + $0x140] sm:$0xff]
        %v451 = vld [vmem:[%s386 + $0x148] sm:$0xff]
        %v452 = vld [vmem:[%s386 + $0x150] sm:$0xff]
        %v453 = vld [vmem:[%s386 + $0x158] sm:$0xff]
        %v454 = vld [vmem:[%s386 + $0x160] sm:$0xff]
        %v455 = vld [vmem:[%s386 + $0x168] sm:$0xff]
        %v456 = vld [vmem:[%s386 + $0x170] sm:$0xff]
        %v457 = vld [vmem:[%s386 + $0x178] sm:$0xff]
        %v458 = vld [vmem:[%s386 + $0x180] sm:$0xff]
        %v459 = vld [vmem:[%s386 + $0x188] sm:$0xff]
        %v460 = vld [vmem:[%s386 + $0x190] sm:$0xff]
        %v461 = vld [vmem:[%s386 + $0x198] sm:$0xff]
        %v462 = vld [vmem:[%s386 + $0x1a0] sm:$0xff]
        %v463 = vld [vmem:[%s386 + $0x1a8] sm:$0xff]
        %v464 = vld [vmem:[%s386 + $0x1b0] sm:$0xff]
        %v465 = vld [vmem:[%s386 + $0x1b8] sm:$0xff]
        %v466 = vld [vmem:[%s386 + $0x1c0] sm:$0xff]
        %v467 = vld [vmem:[%s386 + $0x1c8] sm:$0xff]
        %v468 = vld [vmem:[%s386 + $0x1d0] sm:$0xff]
        %v469 = vld [vmem:[%s386 + $0x1d8] sm:$0xff]
        %v470 = vld [vmem:[%s386 + $0x1e0] sm:$0xff]
        %v471 = vld [vmem:[%s386 + $0x1e8] sm:$0xff]
        %v472 = vld [vmem:[%s386 + $0x1f0] sm:$0xff]
        %v473 = vld [vmem:[%s386 + $0x1f8] sm:$0xff]
        %v474 = vpack.c.bf16 %v411, %v410
        %v475 = vpack.c.bf16 %v413, %v412
        %v476 = vpack.c.bf16 %v415, %v414
        %v477 = vpack.c.bf16 %v417, %v416
        %v478 = vpack.c.bf16 %v419, %v418
        %v479 = vpack.c.bf16 %v421, %v420
        %v480 = vpack.c.bf16 %v423, %v422
        %v481 = vpack.c.bf16 %v425, %v424
        %v482 = vpack.c.bf16 %v427, %v426
        %v483 = vpack.c.bf16 %v429, %v428
        %v484 = vpack.c.bf16 %v431, %v430
        %v485 = vpack.c.bf16 %v433, %v432
        %v486 = vpack.c.bf16 %v435, %v434
        %v487 = vpack.c.bf16 %v437, %v436
        %v488 = vpack.c.bf16 %v439, %v438
        %v489 = vpack.c.bf16 %v441, %v440
        %v490 = vpack.c.bf16 %v443, %v442
        %v491 = vpack.c.bf16 %v445, %v444
        %v492 = vpack.c.bf16 %v447, %v446
        %v493 = vpack.c.bf16 %v449, %v448
        %v494 = vpack.c.bf16 %v451, %v450
        %v495 = vpack.c.bf16 %v453, %v452
        %v496 = vpack.c.bf16 %v455, %v454
        %v497 = vpack.c.bf16 %v457, %v456
        %v498 = vpack.c.bf16 %v459, %v458
        %v499 = vpack.c.bf16 %v461, %v460
        %v500 = vpack.c.bf16 %v463, %v462
        %v501 = vpack.c.bf16 %v465, %v464
        %v502 = vpack.c.bf16 %v467, %v466
        %v503 = vpack.c.bf16 %v469, %v468
        %v504 = vpack.c.bf16 %v471, %v470
        %v505 = vpack.c.bf16 %v473, %v472
        %v506 = vld [vmem:[%s1] sm:$0x3]
        %v507 = vld [vmem:[%s2] sm:$0x1]
        %v509 = vperm.slane %v507, 0
        %vm511 = vcmask 261120
        %v513 = vsel %vm511, %v474, 0
        %v516 = vsel %vm511, %v475, 0
        %v519 = vsel %vm511, %v476, 0
        %v522 = vsel %vm511, %v477, 0
        %v525 = vsel %vm511, %v478, 0
        %v528 = vsel %vm511, %v479, 0
        %v531 = vsel %vm511, %v480, 0
        %v534 = vsel %vm511, %v481, 0
        %v537 = vsel %vm511, %v482, 0
        %v540 = vsel %vm511, %v483, 0
        %v543 = vsel %vm511, %v484, 0
        %v546 = vsel %vm511, %v485, 0
        %v549 = vsel %vm511, %v486, 0
        %v552 = vsel %vm511, %v487, 0
        %v555 = vsel %vm511, %v488, 0
        %v558 = vsel %vm511, %v489, 0
        %v561 = vsel %vm511, %v490, 0
        %v564 = vsel %vm511, %v491, 0
        %v567 = vsel %vm511, %v492, 0
        %v570 = vsel %vm511, %v493, 0
        %v573 = vsel %vm511, %v494, 0
        %v576 = vsel %vm511, %v495, 0
        %v579 = vsel %vm511, %v496, 0
        %v582 = vsel %vm511, %v497, 0
        %v585 = vsel %vm511, %v498, 0
        %v588 = vsel %vm511, %v499, 0
        %v591 = vsel %vm511, %v500, 0
        %v594 = vsel %vm511, %v501, 0
        %v597 = vsel %vm511, %v502, 0
        %v600 = vsel %vm511, %v503, 0
        %v603 = vsel %vm511, %v504, 0
        %v606 = vsel %vm511, %v505, 0
        %v609 = vsel %vm511, %v506, 0
        %611 = vmatpush.bf16.xpose.msra.mxu0 0
        %612 = vmatpush.bf16.xpose.msra.mxu0 0
        %613 = vmatpush.bf16.xpose.msra.mxu0 0
        %614 = vmatpush.bf16.xpose.msra.mxu0 0
        %615 = vmatpush.bf16.xpose.msra.mxu0 0
        %616 = vmatpush.bf16.xpose.msra.mxu0 0
        %617 = vmatpush.bf16.xpose.msra.mxu0 0
        %618 = vmatpush.bf16.xpose.msra.mxu0 %v609
        %619 = vmatmul.bf16.gmra.mxu0 %v513
        %v620 = vpop.f32.mrf.mxu0
        %v621 = vadd.f32 %v509, %v620
        %v622 = vpop.f32.mrf.mxu0
        %v623 = vadd.f32 %v509, %v622
        %624 = vmatmul.bf16.gmra.mxu0 %v516
        %v625 = vpop.f32.mrf.mxu0
        %v626 = vadd.f32 %v509, %v625
        %v627 = vpop.f32.mrf.mxu0
        %v628 = vadd.f32 %v509, %v627
        %629 = vmatmul.bf16.gmra.mxu0 %v519
        %v630 = vpop.f32.mrf.mxu0
        %v631 = vadd.f32 %v509, %v630
        %v632 = vpop.f32.mrf.mxu0
        %v633 = vadd.f32 %v509, %v632
        %634 = vmatmul.bf16.gmra.mxu0 %v522
        %v635 = vpop.f32.mrf.mxu0
        %v636 = vadd.f32 %v509, %v635
        %v637 = vpop.f32.mrf.mxu0
        %v638 = vadd.f32 %v509, %v637
        %639 = vmatmul.bf16.gmra.mxu0 %v525
        %v640 = vpop.f32.mrf.mxu0
        %v641 = vadd.f32 %v509, %v640
        %v642 = vpop.f32.mrf.mxu0
        %v643 = vadd.f32 %v509, %v642
        %644 = vmatmul.bf16.gmra.mxu0 %v528
        %v645 = vpop.f32.mrf.mxu0
        %v646 = vadd.f32 %v509, %v645
        %v647 = vpop.f32.mrf.mxu0
        %v648 = vadd.f32 %v509, %v647
        %649 = vmatmul.bf16.gmra.mxu0 %v531
        %v650 = vpop.f32.mrf.mxu0
        %v651 = vadd.f32 %v509, %v650
        %v652 = vpop.f32.mrf.mxu0
        %v653 = vadd.f32 %v509, %v652
        %654 = vmatmul.bf16.gmra.mxu0 %v534
        %v655 = vpop.f32.mrf.mxu0
        %v656 = vadd.f32 %v509, %v655
        %v657 = vpop.f32.mrf.mxu0
        %v658 = vadd.f32 %v509, %v657
        %659 = vmatmul.bf16.gmra.mxu0 %v537
        %v660 = vpop.f32.mrf.mxu0
        %v661 = vadd.f32 %v509, %v660
        %v662 = vpop.f32.mrf.mxu0
        %v663 = vadd.f32 %v509, %v662
        %664 = vmatmul.bf16.gmra.mxu0 %v540
        %v665 = vpop.f32.mrf.mxu0
        %v666 = vadd.f32 %v509, %v665
        %v667 = vpop.f32.mrf.mxu0
        %v668 = vadd.f32 %v509, %v667
        %669 = vmatmul.bf16.gmra.mxu0 %v543
        %v670 = vpop.f32.mrf.mxu0
        %v671 = vadd.f32 %v509, %v670
        %v672 = vpop.f32.mrf.mxu0
        %v673 = vadd.f32 %v509, %v672
        %674 = vmatmul.bf16.gmra.mxu0 %v546
        %v675 = vpop.f32.mrf.mxu0
        %v676 = vadd.f32 %v509, %v675
        %v677 = vpop.f32.mrf.mxu0
        %v678 = vadd.f32 %v509, %v677
        %679 = vmatmul.bf16.gmra.mxu0 %v549
        %v680 = vpop.f32.mrf.mxu0
        %v681 = vadd.f32 %v509, %v680
        %v682 = vpop.f32.mrf.mxu0
        %v683 = vadd.f32 %v509, %v682
        %684 = vmatmul.bf16.gmra.mxu0 %v552
        %v685 = vpop.f32.mrf.mxu0
        %v686 = vadd.f32 %v509, %v685
        %v687 = vpop.f32.mrf.mxu0
        %v688 = vadd.f32 %v509, %v687
        %689 = vmatmul.bf16.gmra.mxu0 %v555
        %v690 = vpop.f32.mrf.mxu0
        %v691 = vadd.f32 %v509, %v690
        %v692 = vpop.f32.mrf.mxu0
        %v693 = vadd.f32 %v509, %v692
        %694 = vmatmul.bf16.gmra.mxu0 %v558
        %v695 = vpop.f32.mrf.mxu0
        %v696 = vadd.f32 %v509, %v695
        %v697 = vpop.f32.mrf.mxu0
        %v698 = vadd.f32 %v509, %v697
        %699 = vmatmul.bf16.gmra.mxu0 %v561
        %v700 = vpop.f32.mrf.mxu0
        %v701 = vadd.f32 %v509, %v700
        %v702 = vpop.f32.mrf.mxu0
        %v703 = vadd.f32 %v509, %v702
        %704 = vmatmul.bf16.gmra.mxu0 %v564
        %v705 = vpop.f32.mrf.mxu0
        %v706 = vadd.f32 %v509, %v705
        %v707 = vpop.f32.mrf.mxu0
        %v708 = vadd.f32 %v509, %v707
        %709 = vmatmul.bf16.gmra.mxu0 %v567
        %v710 = vpop.f32.mrf.mxu0
        %v711 = vadd.f32 %v509, %v710
        %v712 = vpop.f32.mrf.mxu0
        %v713 = vadd.f32 %v509, %v712
        %714 = vmatmul.bf16.gmra.mxu0 %v570
        %v715 = vpop.f32.mrf.mxu0
        %v716 = vadd.f32 %v509, %v715
        %v717 = vpop.f32.mrf.mxu0
        %v718 = vadd.f32 %v509, %v717
        %719 = vmatmul.bf16.gmra.mxu0 %v573
        %v720 = vpop.f32.mrf.mxu0
        %v721 = vadd.f32 %v509, %v720
        %v722 = vpop.f32.mrf.mxu0
        %v723 = vadd.f32 %v509, %v722
        %724 = vmatmul.bf16.gmra.mxu0 %v576
        %v725 = vpop.f32.mrf.mxu0
        %v726 = vadd.f32 %v509, %v725
        %v727 = vpop.f32.mrf.mxu0
        %v728 = vadd.f32 %v509, %v727
        %729 = vmatmul.bf16.gmra.mxu0 %v579
        %v730 = vpop.f32.mrf.mxu0
        %v731 = vadd.f32 %v509, %v730
        %v732 = vpop.f32.mrf.mxu0
        %v733 = vadd.f32 %v509, %v732
        %734 = vmatmul.bf16.gmra.mxu0 %v582
        %v735 = vpop.f32.mrf.mxu0
        %v736 = vadd.f32 %v509, %v735
        %v737 = vpop.f32.mrf.mxu0
        %v738 = vadd.f32 %v509, %v737
        %739 = vmatmul.bf16.gmra.mxu0 %v585
        %v740 = vpop.f32.mrf.mxu0
        %v741 = vadd.f32 %v509, %v740
        %v742 = vpop.f32.mrf.mxu0
        %v743 = vadd.f32 %v509, %v742
        %744 = vmatmul.bf16.gmra.mxu0 %v588
        %v745 = vpop.f32.mrf.mxu0
        %v746 = vadd.f32 %v509, %v745
        %v747 = vpop.f32.mrf.mxu0
        %v748 = vadd.f32 %v509, %v747
        %749 = vmatmul.bf16.gmra.mxu0 %v591
        %v750 = vpop.f32.mrf.mxu0
        %v751 = vadd.f32 %v509, %v750
        %v752 = vpop.f32.mrf.mxu0
        %v753 = vadd.f32 %v509, %v752
        %754 = vmatmul.bf16.gmra.mxu0 %v594
        %v755 = vpop.f32.mrf.mxu0
        %v756 = vadd.f32 %v509, %v755
        %v757 = vpop.f32.mrf.mxu0
        %v758 = vadd.f32 %v509, %v757
        %759 = vmatmul.bf16.gmra.mxu0 %v597
        %v760 = vpop.f32.mrf.mxu0
        %v761 = vadd.f32 %v509, %v760
        %v762 = vpop.f32.mrf.mxu0
        %v763 = vadd.f32 %v509, %v762
        %764 = vmatmul.bf16.gmra.mxu0 %v600
        %v765 = vpop.f32.mrf.mxu0
        %v766 = vadd.f32 %v509, %v765
        %v767 = vpop.f32.mrf.mxu0
        %v768 = vadd.f32 %v509, %v767
        %769 = vmatmul.bf16.gmra.mxu0 %v603
        %v770 = vpop.f32.mrf.mxu0
        %v771 = vadd.f32 %v509, %v770
        %v772 = vpop.f32.mrf.mxu0
        %v773 = vadd.f32 %v509, %v772
        %774 = vmatmul.bf16.gmra.mxu0 %v606
        %v775 = vpop.f32.mrf.mxu0
        %v776 = vadd.f32 %v509, %v775
        %v777 = vpop.f32.mrf.mxu0
        %v778 = vadd.f32 %v509, %v777
        %779 = vdwg.mxu0
        %v780 = vld [vmem:[%s3] sm:$0x3]
        %v781 = vld [vmem:[%s4] sm:$0xf]
        %783 = vset.pattern.permute.xlu0 0
        %784 = vperm.xlu0 %783, %v781
        %v785 = vpop.permute.xlu0 %784
        %v788 = vsel %vm511, %v780, 0
        %790 = vmatpush.bf16.xpose.msra.mxu0 %v534
        %791 = vmatpush.bf16.xpose.msra.mxu0 %v531
        %792 = vmatpush.bf16.xpose.msra.mxu0 %v528
        %793 = vmatpush.bf16.xpose.msra.mxu0 %v525
        %794 = vmatpush.bf16.xpose.msra.mxu0 %v522
        %795 = vmatpush.bf16.xpose.msra.mxu0 %v519
        %796 = vmatpush.bf16.xpose.msra.mxu0 %v516
        %797 = vmatpush.bf16.xpose.msra.mxu0 %v513
        %798 = vmatmul.bf16.gmra.mxu0 %v788
        %v799 = vpop.f32.mrf.mxu0
        %v800 = vadd.f32 %v785, %v799
        %v801 = vpop.f32.mrf.mxu0
        %802 = vdwg.mxu0
        %803 = vmatpush.bf16.xpose.msra.mxu0 %v558
        %804 = vmatpush.bf16.xpose.msra.mxu0 %v555
        %805 = vmatpush.bf16.xpose.msra.mxu0 %v552
        %806 = vmatpush.bf16.xpose.msra.mxu0 %v549
        %807 = vmatpush.bf16.xpose.msra.mxu0 %v546
        %808 = vmatpush.bf16.xpose.msra.mxu0 %v543
        %809 = vmatpush.bf16.xpose.msra.mxu0 %v540
        %810 = vmatpush.bf16.xpose.msra.mxu0 %v537
        %811 = vmatmul.bf16.gmra.mxu0 %v788
        %v812 = vpop.f32.mrf.mxu0
        %v813 = vadd.f32 %v785, %v812
        %v814 = vpop.f32.mrf.mxu0
        %815 = vdwg.mxu0
        %816 = vmatpush.bf16.xpose.msra.mxu0 %v582
        %817 = vmatpush.bf16.xpose.msra.mxu0 %v579
        %818 = vmatpush.bf16.xpose.msra.mxu0 %v576
        %819 = vmatpush.bf16.xpose.msra.mxu0 %v573
        %820 = vmatpush.bf16.xpose.msra.mxu0 %v570
        %821 = vmatpush.bf16.xpose.msra.mxu0 %v567
        %822 = vmatpush.bf16.xpose.msra.mxu0 %v564
        %823 = vmatpush.bf16.xpose.msra.mxu0 %v561
        %824 = vmatmul.bf16.gmra.mxu0 %v788
        %v825 = vpop.f32.mrf.mxu0
        %v826 = vadd.f32 %v785, %v825
        %v827 = vpop.f32.mrf.mxu0
        %828 = vdwg.mxu0
        %829 = vmatpush.bf16.xpose.msra.mxu0 %v606
        %830 = vmatpush.bf16.xpose.msra.mxu0 %v603
        %831 = vmatpush.bf16.xpose.msra.mxu0 %v600
        %832 = vmatpush.bf16.xpose.msra.mxu0 %v597
        %833 = vmatpush.bf16.xpose.msra.mxu0 %v594
        %834 = vmatpush.bf16.xpose.msra.mxu0 %v591
        %835 = vmatpush.bf16.xpose.msra.mxu0 %v588
        %836 = vmatpush.bf16.xpose.msra.mxu0 %v585
        %837 = vmatmul.bf16.gmra.mxu0 %v788
        %v838 = vpop.f32.mrf.mxu0
        %v839 = vadd.f32 %v785, %v838
        %v840 = vpop.f32.mrf.mxu0
        %841 = vdwg.mxu0
        %v842 = vld [vmem:[%s5] sm:$0xf]
        %v843 = vld [vmem:[%s5 + $0x4] sm:$0xf]
        %v844 = vld [vmem:[%s5 + $0x8] sm:$0xf]
        %v845 = vld [vmem:[%s5 + $0xc] sm:$0xf]
        %v846 = vld [vmem:[%s6] sm:$0x1]
        %v848 = vperm.slane %v846, 0
        %v854 = vunpack.c.l.b16 %v842
        %v855 = vunpack.c.l.b16 %v843
        %v856 = vunpack.c.l.b16 %v844
        %v857 = vunpack.c.l.b16 %v845
        %v858 = vpack.c.b16 %v855, %v854
        %v859 = vpack.c.b16 %v857, %v856
        %v861 = vsel %vm511, %v858, 0
        %v864 = vsel %vm511, %v859, 0
        %866 = vmatpush.bf16.xpose.msra.mxu0 0
        %867 = vmatpush.bf16.xpose.msra.mxu0 0
        %868 = vmatpush.bf16.xpose.msra.mxu0 0
        %869 = vmatpush.bf16.xpose.msra.mxu0 0
        %870 = vmatpush.bf16.xpose.msra.mxu0 0
        %871 = vmatpush.bf16.xpose.msra.mxu0 0
        %872 = vmatpush.bf16.xpose.msra.mxu0 %v864
        %873 = vmatpush.bf16.xpose.msra.mxu0 %v861
        %874 = vmatmul.bf16.gmra.mxu0 %v513
        %v875 = vpop.f32.mrf.mxu0
        %v876 = vadd.f32 %v848, %v875
        %v877 = vpop.f32.mrf.mxu0
        %v878 = vadd.f32 %v848, %v877
        %879 = vmatmul.bf16.gmra.mxu0 %v516
        %v880 = vpop.f32.mrf.mxu0
        %v881 = vadd.f32 %v848, %v880
        %v882 = vpop.f32.mrf.mxu0
        %v883 = vadd.f32 %v848, %v882
        %884 = vmatmul.bf16.gmra.mxu0 %v519
        %v885 = vpop.f32.mrf.mxu0
        %v886 = vadd.f32 %v848, %v885
        %v887 = vpop.f32.mrf.mxu0
        %v888 = vadd.f32 %v848, %v887
        %889 = vmatmul.bf16.gmra.mxu0 %v522
        %v890 = vpop.f32.mrf.mxu0
        %v891 = vadd.f32 %v848, %v890
        %v892 = vpop.f32.mrf.mxu0
        %v893 = vadd.f32 %v848, %v892
        %894 = vmatmul.bf16.gmra.mxu0 %v525
        %v895 = vpop.f32.mrf.mxu0
        %v896 = vadd.f32 %v848, %v895
        %v897 = vpop.f32.mrf.mxu0
        %v898 = vadd.f32 %v848, %v897
        %899 = vmatmul.bf16.gmra.mxu0 %v528
        %v900 = vpop.f32.mrf.mxu0
        %v901 = vadd.f32 %v848, %v900
        %v902 = vpop.f32.mrf.mxu0
        %v903 = vadd.f32 %v848, %v902
        %904 = vmatmul.bf16.gmra.mxu0 %v531
        %v905 = vpop.f32.mrf.mxu0
        %v906 = vadd.f32 %v848, %v905
        %v907 = vpop.f32.mrf.mxu0
        %v908 = vadd.f32 %v848, %v907
        %909 = vmatmul.bf16.gmra.mxu0 %v534
        %v910 = vpop.f32.mrf.mxu0
        %v911 = vadd.f32 %v848, %v910
        %v912 = vpop.f32.mrf.mxu0
        %v913 = vadd.f32 %v848, %v912
        %914 = vmatmul.bf16.gmra.mxu0 %v537
        %v915 = vpop.f32.mrf.mxu0
        %v916 = vadd.f32 %v848, %v915
        %v917 = vpop.f32.mrf.mxu0
        %v918 = vadd.f32 %v848, %v917
        %919 = vmatmul.bf16.gmra.mxu0 %v540
        %v920 = vpop.f32.mrf.mxu0
        %v921 = vadd.f32 %v848, %v920
        %v922 = vpop.f32.mrf.mxu0
        %v923 = vadd.f32 %v848, %v922
        %924 = vmatmul.bf16.gmra.mxu0 %v543
        %v925 = vpop.f32.mrf.mxu0
        %v926 = vadd.f32 %v848, %v925
        %v927 = vpop.f32.mrf.mxu0
        %v928 = vadd.f32 %v848, %v927
        %929 = vmatmul.bf16.gmra.mxu0 %v546
        %v930 = vpop.f32.mrf.mxu0
        %v931 = vadd.f32 %v848, %v930
        %v932 = vpop.f32.mrf.mxu0
        %v933 = vadd.f32 %v848, %v932
        %934 = vmatmul.bf16.gmra.mxu0 %v549
        %v935 = vpop.f32.mrf.mxu0
        %v936 = vadd.f32 %v848, %v935
        %v937 = vpop.f32.mrf.mxu0
        %v938 = vadd.f32 %v848, %v937
        %939 = vmatmul.bf16.gmra.mxu0 %v552
        %v940 = vpop.f32.mrf.mxu0
        %v941 = vadd.f32 %v848, %v940
        %v942 = vpop.f32.mrf.mxu0
        %v943 = vadd.f32 %v848, %v942
        %944 = vmatmul.bf16.gmra.mxu0 %v555
        %v945 = vpop.f32.mrf.mxu0
        %v946 = vadd.f32 %v848, %v945
        %v947 = vpop.f32.mrf.mxu0
        %v948 = vadd.f32 %v848, %v947
        %949 = vmatmul.bf16.gmra.mxu0 %v558
        %v950 = vpop.f32.mrf.mxu0
        %v951 = vadd.f32 %v848, %v950
        %v952 = vpop.f32.mrf.mxu0
        %v953 = vadd.f32 %v848, %v952
        %954 = vmatmul.bf16.gmra.mxu0 %v561
        %v955 = vpop.f32.mrf.mxu0
        %v956 = vadd.f32 %v848, %v955
        %v957 = vpop.f32.mrf.mxu0
        %v958 = vadd.f32 %v848, %v957
        %959 = vmatmul.bf16.gmra.mxu0 %v564
        %v960 = vpop.f32.mrf.mxu0
        %v961 = vadd.f32 %v848, %v960
        %v962 = vpop.f32.mrf.mxu0
        %v963 = vadd.f32 %v848, %v962
        %964 = vmatmul.bf16.gmra.mxu0 %v567
        %v965 = vpop.f32.mrf.mxu0
        %v966 = vadd.f32 %v848, %v965
        %v967 = vpop.f32.mrf.mxu0
        %v968 = vadd.f32 %v848, %v967
        %969 = vmatmul.bf16.gmra.mxu0 %v570
        %v970 = vpop.f32.mrf.mxu0
        %v971 = vadd.f32 %v848, %v970
        %v972 = vpop.f32.mrf.mxu0
        %v973 = vadd.f32 %v848, %v972
        %974 = vmatmul.bf16.gmra.mxu0 %v573
        %v975 = vpop.f32.mrf.mxu0
        %v976 = vadd.f32 %v848, %v975
        %v977 = vpop.f32.mrf.mxu0
        %v978 = vadd.f32 %v848, %v977
        %979 = vmatmul.bf16.gmra.mxu0 %v576
        %v980 = vpop.f32.mrf.mxu0
        %v981 = vadd.f32 %v848, %v980
        %v982 = vpop.f32.mrf.mxu0
        %v983 = vadd.f32 %v848, %v982
        %984 = vmatmul.bf16.gmra.mxu0 %v579
        %v985 = vpop.f32.mrf.mxu0
        %v986 = vadd.f32 %v848, %v985
        %v987 = vpop.f32.mrf.mxu0
        %v988 = vadd.f32 %v848, %v987
        %989 = vmatmul.bf16.gmra.mxu0 %v582
        %v990 = vpop.f32.mrf.mxu0
        %v991 = vadd.f32 %v848, %v990
        %v992 = vpop.f32.mrf.mxu0
        %v993 = vadd.f32 %v848, %v992
        %994 = vmatmul.bf16.gmra.mxu0 %v585
        %v995 = vpop.f32.mrf.mxu0
        %v996 = vadd.f32 %v848, %v995
        %v997 = vpop.f32.mrf.mxu0
        %v998 = vadd.f32 %v848, %v997
        %999 = vmatmul.bf16.gmra.mxu0 %v588
        %v1000 = vpop.f32.mrf.mxu0
        %v1001 = vadd.f32 %v848, %v1000
        %v1002 = vpop.f32.mrf.mxu0
        %v1003 = vadd.f32 %v848, %v1002
        %1004 = vmatmul.bf16.gmra.mxu0 %v591
        %v1005 = vpop.f32.mrf.mxu0
        %v1006 = vadd.f32 %v848, %v1005
        %v1007 = vpop.f32.mrf.mxu0
        %v1008 = vadd.f32 %v848, %v1007
        %1009 = vmatmul.bf16.gmra.mxu0 %v594
        %v1010 = vpop.f32.mrf.mxu0
        %v1011 = vadd.f32 %v848, %v1010
        %v1012 = vpop.f32.mrf.mxu0
        %v1013 = vadd.f32 %v848, %v1012
        %1014 = vmatmul.bf16.gmra.mxu0 %v597
        %v1015 = vpop.f32.mrf.mxu0
        %v1016 = vadd.f32 %v848, %v1015
        %v1017 = vpop.f32.mrf.mxu0
        %v1018 = vadd.f32 %v848, %v1017
        %1019 = vmatmul.bf16.gmra.mxu0 %v600
        %v1020 = vpop.f32.mrf.mxu0
        %v1021 = vadd.f32 %v848, %v1020
        %v1022 = vpop.f32.mrf.mxu0
        %v1023 = vadd.f32 %v848, %v1022
        %1024 = vmatmul.bf16.gmra.mxu0 %v603
        %v1025 = vpop.f32.mrf.mxu0
        %v1026 = vadd.f32 %v848, %v1025
        %v1027 = vpop.f32.mrf.mxu0
        %v1028 = vadd.f32 %v848, %v1027
        %1029 = vmatmul.bf16.gmra.mxu0 %v606
        %v1030 = vpop.f32.mrf.mxu0
        %v1031 = vadd.f32 %v848, %v1030
        %v1032 = vpop.f32.mrf.mxu0
        %v1033 = vadd.f32 %v848, %v1032
        %1034 = vdwg.mxu0
        %v1035 = vpack.c.bf16 %v621, %v621
        %v1036 = vpack.c.bf16 %v623, %v623
        %v1037 = vpack.c.bf16 %v626, %v626
        %v1038 = vpack.c.bf16 %v628, %v628
        %v1039 = vpack.c.bf16 %v631, %v631
        %v1040 = vpack.c.bf16 %v633, %v633
        %v1041 = vpack.c.bf16 %v636, %v636
        %v1042 = vpack.c.bf16 %v638, %v638
        %v1043 = vpack.c.bf16 %v641, %v641
        %v1044 = vpack.c.bf16 %v643, %v643
        %v1045 = vpack.c.bf16 %v646, %v646
        %v1046 = vpack.c.bf16 %v648, %v648
        %v1047 = vpack.c.bf16 %v651, %v651
        %v1048 = vpack.c.bf16 %v653, %v653
        %v1049 = vpack.c.bf16 %v656, %v656
        %v1050 = vpack.c.bf16 %v658, %v658
        %v1051 = vpack.c.bf16 %v661, %v661
        %v1052 = vpack.c.bf16 %v663, %v663
        %v1053 = vpack.c.bf16 %v666, %v666
        %v1054 = vpack.c.bf16 %v668, %v668
        %v1055 = vpack.c.bf16 %v671, %v671
        %v1056 = vpack.c.bf16 %v673, %v673
        %v1057 = vpack.c.bf16 %v676, %v676
        %v1058 = vpack.c.bf16 %v678, %v678
        %v1059 = vpack.c.bf16 %v681, %v681
        %v1060 = vpack.c.bf16 %v683, %v683
        %v1061 = vpack.c.bf16 %v686, %v686
        %v1062 = vpack.c.bf16 %v688, %v688
        %v1063 = vpack.c.bf16 %v691, %v691
        %v1064 = vpack.c.bf16 %v693, %v693
        %v1065 = vpack.c.bf16 %v696, %v696
        %v1066 = vpack.c.bf16 %v698, %v698
        %v1067 = vpack.c.bf16 %v701, %v701
        %v1068 = vpack.c.bf16 %v703, %v703
        %v1069 = vpack.c.bf16 %v706, %v706
        %v1070 = vpack.c.bf16 %v708, %v708
        %v1071 = vpack.c.bf16 %v711, %v711
        %v1072 = vpack.c.bf16 %v713, %v713
        %v1073 = vpack.c.bf16 %v716, %v716
        %v1074 = vpack.c.bf16 %v718, %v718
        %v1075 = vpack.c.bf16 %v721, %v721
        %v1076 = vpack.c.bf16 %v723, %v723
        %v1077 = vpack.c.bf16 %v726, %v726
        %v1078 = vpack.c.bf16 %v728, %v728
        %v1079 = vpack.c.bf16 %v731, %v731
        %v1080 = vpack.c.bf16 %v733, %v733
        %v1081 = vpack.c.bf16 %v736, %v736
        %v1082 = vpack.c.bf16 %v738, %v738
        %v1083 = vpack.c.bf16 %v741, %v741
        %v1084 = vpack.c.bf16 %v743, %v743
        %v1085 = vpack.c.bf16 %v746, %v746
        %v1086 = vpack.c.bf16 %v748, %v748
        %v1087 = vpack.c.bf16 %v751, %v751
        %v1088 = vpack.c.bf16 %v753, %v753
        %v1089 = vpack.c.bf16 %v756, %v756
        %v1090 = vpack.c.bf16 %v758, %v758
        %v1091 = vpack.c.bf16 %v761, %v761
        %v1092 = vpack.c.bf16 %v763, %v763
        %v1093 = vpack.c.bf16 %v766, %v766
        %v1094 = vpack.c.bf16 %v768, %v768
        %v1095 = vpack.c.bf16 %v771, %v771
        %v1096 = vpack.c.bf16 %v773, %v773
        %v1097 = vpack.c.bf16 %v776, %v776
        %v1098 = vpack.c.bf16 %v778, %v778
        %vm1099 = vcmask 27648
        %1100 = vst.msk [vmem:[%s396] sm:$0xf] %vm1099, %v1035
        %1101 = vst.msk [vmem:[%s396 + $0x4] sm:$0xf] %vm1099, %v1036
        %1102 = vst.msk [vmem:[%s396 + $0x8] sm:$0xf] %vm1099, %v1037
        %1103 = vst.msk [vmem:[%s396 + $0xc] sm:$0xf] %vm1099, %v1038
        %1104 = vst.msk [vmem:[%s396 + $0x10] sm:$0xf] %vm1099, %v1039
        %1105 = vst.msk [vmem:[%s396 + $0x14] sm:$0xf] %vm1099, %v1040
        %1106 = vst.msk [vmem:[%s396 + $0x18] sm:$0xf] %vm1099, %v1041
        %1107 = vst.msk [vmem:[%s396 + $0x1c] sm:$0xf] %vm1099, %v1042
        %1108 = vst.msk [vmem:[%s396 + $0x20] sm:$0xf] %vm1099, %v1043
        %1109 = vst.msk [vmem:[%s396 + $0x24] sm:$0xf] %vm1099, %v1044
        %1110 = vst.msk [vmem:[%s396 + $0x28] sm:$0xf] %vm1099, %v1045
        %1111 = vst.msk [vmem:[%s396 + $0x2c] sm:$0xf] %vm1099, %v1046
        %1112 = vst.msk [vmem:[%s396 + $0x30] sm:$0xf] %vm1099, %v1047
        %1113 = vst.msk [vmem:[%s396 + $0x34] sm:$0xf] %vm1099, %v1048
        %1114 = vst.msk [vmem:[%s396 + $0x38] sm:$0xf] %vm1099, %v1049
        %1115 = vst.msk [vmem:[%s396 + $0x3c] sm:$0xf] %vm1099, %v1050
        %1116 = vst.msk [vmem:[%s396 + $0x40] sm:$0xf] %vm1099, %v1051
        %1117 = vst.msk [vmem:[%s396 + $0x44] sm:$0xf] %vm1099, %v1052
        %1118 = vst.msk [vmem:[%s396 + $0x48] sm:$0xf] %vm1099, %v1053
        %1119 = vst.msk [vmem:[%s396 + $0x4c] sm:$0xf] %vm1099, %v1054
        %1120 = vst.msk [vmem:[%s396 + $0x50] sm:$0xf] %vm1099, %v1055
        %1121 = vst.msk [vmem:[%s396 + $0x54] sm:$0xf] %vm1099, %v1056
        %1122 = vst.msk [vmem:[%s396 + $0x58] sm:$0xf] %vm1099, %v1057
        %1123 = vst.msk [vmem:[%s396 + $0x5c] sm:$0xf] %vm1099, %v1058
        %1124 = vst.msk [vmem:[%s396 + $0x60] sm:$0xf] %vm1099, %v1059
        %1125 = vst.msk [vmem:[%s396 + $0x64] sm:$0xf] %vm1099, %v1060
        %1126 = vst.msk [vmem:[%s396 + $0x68] sm:$0xf] %vm1099, %v1061
        %1127 = vst.msk [vmem:[%s396 + $0x6c] sm:$0xf] %vm1099, %v1062
        %1128 = vst.msk [vmem:[%s396 + $0x70] sm:$0xf] %vm1099, %v1063
        %1129 = vst.msk [vmem:[%s396 + $0x74] sm:$0xf] %vm1099, %v1064
        %1130 = vst.msk [vmem:[%s396 + $0x78] sm:$0xf] %vm1099, %v1065
        %1131 = vst.msk [vmem:[%s396 + $0x7c] sm:$0xf] %vm1099, %v1066
        %1132 = vst.msk [vmem:[%s396 + $0x80] sm:$0xf] %vm1099, %v1067
        %1133 = vst.msk [vmem:[%s396 + $0x84] sm:$0xf] %vm1099, %v1068
        %1134 = vst.msk [vmem:[%s396 + $0x88] sm:$0xf] %vm1099, %v1069
        %1135 = vst.msk [vmem:[%s396 + $0x8c] sm:$0xf] %vm1099, %v1070
        %1136 = vst.msk [vmem:[%s396 + $0x90] sm:$0xf] %vm1099, %v1071
        %1137 = vst.msk [vmem:[%s396 + $0x94] sm:$0xf] %vm1099, %v1072
        %1138 = vst.msk [vmem:[%s396 + $0x98] sm:$0xf] %vm1099, %v1073
        %1139 = vst.msk [vmem:[%s396 + $0x9c] sm:$0xf] %vm1099, %v1074
        %1140 = vst.msk [vmem:[%s396 + $0xa0] sm:$0xf] %vm1099, %v1075
        %1141 = vst.msk [vmem:[%s396 + $0xa4] sm:$0xf] %vm1099, %v1076
        %1142 = vst.msk [vmem:[%s396 + $0xa8] sm:$0xf] %vm1099, %v1077
        %1143 = vst.msk [vmem:[%s396 + $0xac] sm:$0xf] %vm1099, %v1078
        %1144 = vst.msk [vmem:[%s396 + $0xb0] sm:$0xf] %vm1099, %v1079
        %1145 = vst.msk [vmem:[%s396 + $0xb4] sm:$0xf] %vm1099, %v1080
        %1146 = vst.msk [vmem:[%s396 + $0xb8] sm:$0xf] %vm1099, %v1081
        %1147 = vst.msk [vmem:[%s396 + $0xbc] sm:$0xf] %vm1099, %v1082
        %1148 = vst.msk [vmem:[%s396 + $0xc0] sm:$0xf] %vm1099, %v1083
        %1149 = vst.msk [vmem:[%s396 + $0xc4] sm:$0xf] %vm1099, %v1084
        %1150 = vst.msk [vmem:[%s396 + $0xc8] sm:$0xf] %vm1099, %v1085
        %1151 = vst.msk [vmem:[%s396 + $0xcc] sm:$0xf] %vm1099, %v1086
        %1152 = vst.msk [vmem:[%s396 + $0xd0] sm:$0xf] %vm1099, %v1087
        %1153 = vst.msk [vmem:[%s396 + $0xd4] sm:$0xf] %vm1099, %v1088
        %1154 = vst.msk [vmem:[%s396 + $0xd8] sm:$0xf] %vm1099, %v1089
        %1155 = vst.msk [vmem:[%s396 + $0xdc] sm:$0xf] %vm1099, %v1090
        %1156 = vst.msk [vmem:[%s396 + $0xe0] sm:$0xf] %vm1099, %v1091
        %1157 = vst.msk [vmem:[%s396 + $0xe4] sm:$0xf] %vm1099, %v1092
        %1158 = vst.msk [vmem:[%s396 + $0xe8] sm:$0xf] %vm1099, %v1093
        %1159 = vst.msk [vmem:[%s396 + $0xec] sm:$0xf] %vm1099, %v1094
        %1160 = vst.msk [vmem:[%s396 + $0xf0] sm:$0xf] %vm1099, %v1095
        %1161 = vst.msk [vmem:[%s396 + $0xf4] sm:$0xf] %vm1099, %v1096
        %1162 = vst.msk [vmem:[%s396 + $0xf8] sm:$0xf] %vm1099, %v1097
        %1163 = vst.msk [vmem:[%s396 + $0xfc] sm:$0xf] %vm1099, %v1098
        %v1164 = vpack.c.bf16 %v813, %v800
        %v1165 = vpack.c.bf16 %v839, %v826
        %v1168 = vrot.slane %v1164, 2
        %v1169 = vrot.slane %v1165, 4
        %v1170 = vrot.slane %v1165, 6
        %vm1171 = vcmask 1041408
        %v1174 = vsel %vm1171, %v1164, %v1168
        %vm1175 = vcmask 1045508
        %v1178 = vsel %vm1175, %v1169, %v1170
        %vm1179 = vcmask 1043456
        %v1180 = vsel %vm1179, %v1174, %v1178
        %1182 = vst [vmem:[%s366] sm:$0xff] %v1180
        %v1183 = vpack.c.bf16 %v876, %v876
        %v1184 = vpack.c.bf16 %v878, %v878
        %v1185 = vpack.c.bf16 %v881, %v881
        %v1186 = vpack.c.bf16 %v883, %v883
        %v1187 = vpack.c.bf16 %v886, %v886
        %v1188 = vpack.c.bf16 %v888, %v888
        %v1189 = vpack.c.bf16 %v891, %v891
        %v1190 = vpack.c.bf16 %v893, %v893
        %v1191 = vpack.c.bf16 %v896, %v896
        %v1192 = vpack.c.bf16 %v898, %v898
        %v1193 = vpack.c.bf16 %v901, %v901
        %v1194 = vpack.c.bf16 %v903, %v903
        %v1195 = vpack.c.bf16 %v906, %v906
        %v1196 = vpack.c.bf16 %v908, %v908
        %v1197 = vpack.c.bf16 %v911, %v911
        %v1198 = vpack.c.bf16 %v913, %v913
        %v1199 = vpack.c.bf16 %v916, %v916
        %v1200 = vpack.c.bf16 %v918, %v918
        %v1201 = vpack.c.bf16 %v921, %v921
        %v1202 = vpack.c.bf16 %v923, %v923
        %v1203 = vpack.c.bf16 %v926, %v926
        %v1204 = vpack.c.bf16 %v928, %v928
        %v1205 = vpack.c.bf16 %v931, %v931
        %v1206 = vpack.c.bf16 %v933, %v933
        %v1207 = vpack.c.bf16 %v936, %v936
        %v1208 = vpack.c.bf16 %v938, %v938
        %v1209 = vpack.c.bf16 %v941, %v941
        %v1210 = vpack.c.bf16 %v943, %v943
        %v1211 = vpack.c.bf16 %v946, %v946
        %v1212 = vpack.c.bf16 %v948, %v948
        %v1213 = vpack.c.bf16 %v951, %v951
        %v1214 = vpack.c.bf16 %v953, %v953
        %v1215 = vpack.c.bf16 %v956, %v956
        %v1216 = vpack.c.bf16 %v958, %v958
        %v1217 = vpack.c.bf16 %v961, %v961
        %v1218 = vpack.c.bf16 %v963, %v963
        %v1219 = vpack.c.bf16 %v966, %v966
        %v1220 = vpack.c.bf16 %v968, %v968
        %v1221 = vpack.c.bf16 %v971, %v971
        %v1222 = vpack.c.bf16 %v973, %v973
        %v1223 = vpack.c.bf16 %v976, %v976
        %v1224 = vpack.c.bf16 %v978, %v978
        %v1225 = vpack.c.bf16 %v981, %v981
        %v1226 = vpack.c.bf16 %v983, %v983
        %v1227 = vpack.c.bf16 %v986, %v986
        %v1228 = vpack.c.bf16 %v988, %v988
        %v1229 = vpack.c.bf16 %v991, %v991
        %v1230 = vpack.c.bf16 %v993, %v993
        %v1231 = vpack.c.bf16 %v996, %v996
        %v1232 = vpack.c.bf16 %v998, %v998
        %v1233 = vpack.c.bf16 %v1001, %v1001
        %v1234 = vpack.c.bf16 %v1003, %v1003
        %v1235 = vpack.c.bf16 %v1006, %v1006
        %v1236 = vpack.c.bf16 %v1008, %v1008
        %v1237 = vpack.c.bf16 %v1011, %v1011
        %v1238 = vpack.c.bf16 %v1013, %v1013
        %v1239 = vpack.c.bf16 %v1016, %v1016
        %v1240 = vpack.c.bf16 %v1018, %v1018
        %v1241 = vpack.c.bf16 %v1021, %v1021
        %v1242 = vpack.c.bf16 %v1023, %v1023
        %v1243 = vpack.c.bf16 %v1026, %v1026
        %v1244 = vpack.c.bf16 %v1028, %v1028
        %v1245 = vpack.c.bf16 %v1031, %v1031
        %v1246 = vpack.c.bf16 %v1033, %v1033
        %vm1247 = vcmask 257024
        %1248 = vst.msk [vmem:[%s407] sm:$0xf] %vm1247, %v1183
        %1249 = vst.msk [vmem:[%s407 + $0x4] sm:$0xf] %vm1247, %v1184
        %1250 = vst.msk [vmem:[%s407 + $0x8] sm:$0xf] %vm1247, %v1185
        %1251 = vst.msk [vmem:[%s407 + $0xc] sm:$0xf] %vm1247, %v1186
        %1252 = vst.msk [vmem:[%s407 + $0x10] sm:$0xf] %vm1247, %v1187
        %1253 = vst.msk [vmem:[%s407 + $0x14] sm:$0xf] %vm1247, %v1188
        %1254 = vst.msk [vmem:[%s407 + $0x18] sm:$0xf] %vm1247, %v1189
        %1255 = vst.msk [vmem:[%s407 + $0x1c] sm:$0xf] %vm1247, %v1190
        %1256 = vst.msk [vmem:[%s407 + $0x20] sm:$0xf] %vm1247, %v1191
        %1257 = vst.msk [vmem:[%s407 + $0x24] sm:$0xf] %vm1247, %v1192
        %1258 = vst.msk [vmem:[%s407 + $0x28] sm:$0xf] %vm1247, %v1193
        %1259 = vst.msk [vmem:[%s407 + $0x2c] sm:$0xf] %vm1247, %v1194
        %1260 = vst.msk [vmem:[%s407 + $0x30] sm:$0xf] %vm1247, %v1195
        %1261 = vst.msk [vmem:[%s407 + $0x34] sm:$0xf] %vm1247, %v1196
        %1262 = vst.msk [vmem:[%s407 + $0x38] sm:$0xf] %vm1247, %v1197
        %1263 = vst.msk [vmem:[%s407 + $0x3c] sm:$0xf] %vm1247, %v1198
        %1264 = vst.msk [vmem:[%s407 + $0x40] sm:$0xf] %vm1247, %v1199
        %1265 = vst.msk [vmem:[%s407 + $0x44] sm:$0xf] %vm1247, %v1200
        %1266 = vst.msk [vmem:[%s407 + $0x48] sm:$0xf] %vm1247, %v1201
        %1267 = vst.msk [vmem:[%s407 + $0x4c] sm:$0xf] %vm1247, %v1202
        %1268 = vst.msk [vmem:[%s407 + $0x50] sm:$0xf] %vm1247, %v1203
        %1269 = vst.msk [vmem:[%s407 + $0x54] sm:$0xf] %vm1247, %v1204
        %1270 = vst.msk [vmem:[%s407 + $0x58] sm:$0xf] %vm1247, %v1205
        %1271 = vst.msk [vmem:[%s407 + $0x5c] sm:$0xf] %vm1247, %v1206
        %1272 = vst.msk [vmem:[%s407 + $0x60] sm:$0xf] %vm1247, %v1207
        %1273 = vst.msk [vmem:[%s407 + $0x64] sm:$0xf] %vm1247, %v1208
        %1274 = vst.msk [vmem:[%s407 + $0x68] sm:$0xf] %vm1247, %v1209
        %1275 = vst.msk [vmem:[%s407 + $0x6c] sm:$0xf] %vm1247, %v1210
        %1276 = vst.msk [vmem:[%s407 + $0x70] sm:$0xf] %vm1247, %v1211
        %1277 = vst.msk [vmem:[%s407 + $0x74] sm:$0xf] %vm1247, %v1212
        %1278 = vst.msk [vmem:[%s407 + $0x78] sm:$0xf] %vm1247, %v1213
        %1279 = vst.msk [vmem:[%s407 + $0x7c] sm:$0xf] %vm1247, %v1214
        %1280 = vst.msk [vmem:[%s407 + $0x80] sm:$0xf] %vm1247, %v1215
        %1281 = vst.msk [vmem:[%s407 + $0x84] sm:$0xf] %vm1247, %v1216
        %1282 = vst.msk [vmem:[%s407 + $0x88] sm:$0xf] %vm1247, %v1217
        %1283 = vst.msk [vmem:[%s407 + $0x8c] sm:$0xf] %vm1247, %v1218
        %1284 = vst.msk [vmem:[%s407 + $0x90] sm:$0xf] %vm1247, %v1219
        %1285 = vst.msk [vmem:[%s407 + $0x94] sm:$0xf] %vm1247, %v1220
        %1286 = vst.msk [vmem:[%s407 + $0x98] sm:$0xf] %vm1247, %v1221
        %1287 = vst.msk [vmem:[%s407 + $0x9c] sm:$0xf] %vm1247, %v1222
        %1288 = vst.msk [vmem:[%s407 + $0xa0] sm:$0xf] %vm1247, %v1223
        %1289 = vst.msk [vmem:[%s407 + $0xa4] sm:$0xf] %vm1247, %v1224
        %1290 = vst.msk [vmem:[%s407 + $0xa8] sm:$0xf] %vm1247, %v1225
        %1291 = vst.msk [vmem:[%s407 + $0xac] sm:$0xf] %vm1247, %v1226
        %1292 = vst.msk [vmem:[%s407 + $0xb0] sm:$0xf] %vm1247, %v1227
        %1293 = vst.msk [vmem:[%s407 + $0xb4] sm:$0xf] %vm1247, %v1228
        %1294 = vst.msk [vmem:[%s407 + $0xb8] sm:$0xf] %vm1247, %v1229
        %1295 = vst.msk [vmem:[%s407 + $0xbc] sm:$0xf] %vm1247, %v1230
        %1296 = vst.msk [vmem:[%s407 + $0xc0] sm:$0xf] %vm1247, %v1231
        %1297 = vst.msk [vmem:[%s407 + $0xc4] sm:$0xf] %vm1247, %v1232
        %1298 = vst.msk [vmem:[%s407 + $0xc8] sm:$0xf] %vm1247, %v1233
        %1299 = vst.msk [vmem:[%s407 + $0xcc] sm:$0xf] %vm1247, %v1234
        %1300 = vst.msk [vmem:[%s407 + $0xd0] sm:$0xf] %vm1247, %v1235
        %1301 = vst.msk [vmem:[%s407 + $0xd4] sm:$0xf] %vm1247, %v1236
        %1302 = vst.msk [vmem:[%s407 + $0xd8] sm:$0xf] %vm1247, %v1237
        %1303 = vst.msk [vmem:[%s407 + $0xdc] sm:$0xf] %vm1247, %v1238
        %1304 = vst.msk [vmem:[%s407 + $0xe0] sm:$0xf] %vm1247, %v1239
        %1305 = vst.msk [vmem:[%s407 + $0xe4] sm:$0xf] %vm1247, %v1240
        %1306 = vst.msk [vmem:[%s407 + $0xe8] sm:$0xf] %vm1247, %v1241
        %1307 = vst.msk [vmem:[%s407 + $0xec] sm:$0xf] %vm1247, %v1242
        %1308 = vst.msk [vmem:[%s407 + $0xf0] sm:$0xf] %vm1247, %v1243
        %1309 = vst.msk [vmem:[%s407 + $0xf4] sm:$0xf] %vm1247, %v1244
        %1310 = vst.msk [vmem:[%s407 + $0xf8] sm:$0xf] %vm1247, %v1245
        %1311 = vst.msk [vmem:[%s407 + $0xfc] sm:$0xf] %vm1247, %v1246
        %s1312 = smul.u32 64, %s29
        %p1313 = scmp.lt.s32.totalorder %s28, 1
        %s1314 = scalar_select %p1313, %s28, 1
        %p1315 = scmp.lt.s32.totalorder %s1312, 511
        %s1316 = scalar_select %p1315, %s1312, 511
        %s1317 = smul.addr %s1314, 512
        %s1318 = sadd.s32 %s1316, %s1317
        %s1319 = smul.addr %s1318, 4
        %s1320 = scalar_lea.vmem %s7, %s1319
        %s1321 = sand.u32 %s228, 1
        %s1322 = scalar_lea.sflag [#allocation3], %s1321
        %s1323 = sand.u32 %s228, 1
        %s1324 = smul.addr %s1323, 8
        %s1325 = scalar_lea.vmem [#allocation2], %s1324
        %s1326 = smul.u32 64, %s29
        %p1327 = scmp.lt.s32.totalorder %s28, 1
        %s1328 = scalar_select %p1327, %s28, 1
        %p1329 = scmp.lt.s32.totalorder %s1326, 511
        %s1330 = scalar_select %p1329, %s1326, 511
        %s1331 = smul.addr %s1328, 512
        %s1332 = sadd.s32 %s1330, %s1331
        %s1333 = smul.addr %s1332, 4
        %s1334 = scalar_lea.vmem %s9, %s1333
        // Predicated region
        $region49: #{tpu_custom_call.1} parent=47 // pred_check
          %p1335 = pneg %p210
        $region50: #{tpu_custom_call.1} parent=47 // pred_check_branch
          %1337 = sbr.rel (%p1335) target = $region52
        $region51: #{tpu_custom_call.1} parent=47 // pred_region
          %s1338 = smul.u32 64, %s29
        $region52: #{tpu_custom_call.1} parent=47 // pred_fallthru
          _
        // Predicated region
        $region53: #{tpu_custom_call.1} parent=47 // pred_check
          %p1339 = pneg %p238
        $region54: #{tpu_custom_call.1} parent=47 // pred_check_branch
          %1341 = sbr.rel (%p1339) target = $region56
        $region55: #{tpu_custom_call.1} parent=47 // pred_region
          %s1342 = smul.u32 4, %s29
          %1344 = vsyncadd %s1322, 0
          %s1345 = smul.addr %s28, 32
          %s1346 = sadd.s32 %s1342, %s1345
          %s1347 = smul.addr %s1346, 2
          %s1348 = scalar_lea.hbm %s8, %s1347
          %s1350 = sshll.u32 %s1325, 4
          %s1351 = int_to_ptr.vmem [resolvable:$true] %s1350
          %s1352 = sshll.u32 %s1348, 4
          %s1353 = int_to_ptr.hbm [resolvable:$true] %s1352
          %1355 = dma.vmem_to_hbm [thread:$0]  %s1351, 128, %s1353, %s1322
        $region56: #{tpu_custom_call.1} parent=47 // pred_fallthru
          _
        // Predicated region
        $region57: #{tpu_custom_call.1} parent=47 // pred_check
          %p1356 = pneg %p266
        $region58: #{tpu_custom_call.1} parent=47 // pred_check_branch
          %1358 = sbr.rel (%p1356) target = $region60
        $region59: #{tpu_custom_call.1} parent=47 // pred_region
          %s1359 = smul.u32 64, %s29
        $region60: #{tpu_custom_call.1} parent=47 // pred_fallthru
          _
      $region48: #{tpu_custom_call.1} parent=5 // pred_fallthru
        _
      %p1360 = scmp.le.s32.totalorder 2, %s19
      // Predicated region
      $region61: #{tpu_custom_call.1} parent=5 // pred_check
        %p1361 = pneg %p1360
      $region62: #{tpu_custom_call.1} parent=5 // pred_check_branch
        %1363 = sbr.rel (%p1361) target = $region64
      $region63: #{tpu_custom_call.1} parent=5 // pred_region
        %s1364 = ssub.s32 %s19, 2
        // Predicated region
        $region65: #{tpu_custom_call.1} parent=63 // pred_check
          %p1365 = pneg %p216
        $region66: #{tpu_custom_call.1} parent=63 // pred_check_branch
          %1367 = sbr.rel (%p1365) target = $region68
        $region67: #{tpu_custom_call.1} parent=63 // pred_region
          %s1368 = smul.u32 64, %s31
          %p1369 = scmp.lt.s32.totalorder %s30, 1
          %s1370 = scalar_select %p1369, %s30, 1
          %p1371 = scmp.lt.s32.totalorder %s1368, 511
          %s1372 = scalar_select %p1371, %s1368, 511
          %s1373 = smul.addr %s1370, 512
          %s1374 = sadd.s32 %s1372, %s1373
          %s1375 = smul.addr %s1374, 4
          %s1376 = scalar_lea.vmem %s7, %s1375
        $region68: #{tpu_custom_call.1} parent=63 // pred_fallthru
          _
        // Predicated region
        $region69: #{tpu_custom_call.1} parent=63 // pred_check
          %p1377 = pneg %p244
        $region70: #{tpu_custom_call.1} parent=63 // pred_check_branch
          %1379 = sbr.rel (%p1377) target = $region72
        $region71: #{tpu_custom_call.1} parent=63 // pred_region
          %s1380 = sand.u32 %s229, 1
          %s1381 = scalar_lea.sflag [#allocation3], %s1380
          %s1382 = sand.u32 %s229, 1
          %s1383 = smul.addr %s1382, 8
          %s1384 = scalar_lea.vmem [#allocation2], %s1383
          %1386 = dma.done %s1381, 128
        $region72: #{tpu_custom_call.1} parent=63 // pred_fallthru
          _
        // Predicated region
        $region73: #{tpu_custom_call.1} parent=63 // pred_check
          %p1387 = pneg %p272
        $region74: #{tpu_custom_call.1} parent=63 // pred_check_branch
          %1389 = sbr.rel (%p1387) target = $region76
        $region75: #{tpu_custom_call.1} parent=63 // pred_region
          %s1390 = smul.u32 64, %s31
          %p1391 = scmp.lt.s32.totalorder %s30, 1
          %s1392 = scalar_select %p1391, %s30, 1
          %p1393 = scmp.lt.s32.totalorder %s1390, 511
          %s1394 = scalar_select %p1393, %s1390, 511
          %s1395 = smul.addr %s1392, 512
          %s1396 = sadd.s32 %s1394, %s1395
          %s1397 = smul.addr %s1396, 4
          %s1398 = scalar_lea.vmem %s9, %s1397
        $region76: #{tpu_custom_call.1} parent=63 // pred_fallthru
          _
      $region64: #{tpu_custom_call.1} parent=5 // pred_fallthru
        _
    $region6: #{tpu_custom_call.1} parent=1 // loop_footer
      %s23 = sadd.s32 1, %s19
    $region7: #{tpu_custom_call.1} parent=1 // loop_footer_branch
      %18 = sbr.rel target = $region3
    $region8: #{tpu_custom_call.1} parent=1 // loop_exit
      _
    %1399 = vsyncpa [#allocation3], 1
    %s1400 = scalar_lea.sflag [#allocation3], 1
    %1401 = vsyncpa %s1400, 1

</llo_original>
